<compile_context>
chip_gen: v7x
topology: tpu7x:2x2x1
jax: 0.10.0
libtpu: 0.0.40
codegen_flags: <defaults>
</compile_context>

<pallas_src>
import functools

import jax
import jax.numpy as jnp
from jax.experimental import pallas as pl
from jax.experimental.pallas import tpu as pltpu

LN_EPS = 1e-5


def _round_up(v, m):
    return (v + m - 1) // m * m


def _tpu_generation():
    try:
        kind = jax.devices()[0].device_kind.lower()
    except Exception:
        return None
    for v in (7, 6, 5, 4):
        if f"v{v}" in kind:
            return v
    return None


def _layer_norm(h, gamma, beta, inv_h):
    # nn.LayerNorm semantics (biased variance, eps inside the sqrt), one-pass E[x^2]-E[x]^2 form.
    # Dividing by the TRUE feature count (inv_h) keeps zero-padded lanes exact.
    mu = jnp.sum(h, axis=-1, keepdims=True) * inv_h
    e2 = jnp.sum(h * h, axis=-1, keepdims=True) * inv_h
    var = jnp.maximum(e2 - mu * mu, 0.0)  # guard f32 cancellation on near-constant rows
    return (h - mu) * jax.lax.rsqrt(var + LN_EPS) * gamma + beta


def _split_rows(h, n_split):
    if n_split <= 1:
        return [h]
    half = h.shape[0] // 2
    return [h[:half], h[half:]]


def _dnn_layer(parts, w, b, g, beta, inv_h, mm_dtype):
    # All row-halves' matmuls first (mutually independent), then the tanh+LayerNorm tails, as
    # ONE traced expression: lets the LLO scheduler overlap half-B's vmatmul pushes with
    # half-A's EUP/XLU/VPU tail.
    ms = [jnp.dot(p.astype(mm_dtype), w, preferred_element_type=jnp.float32) + b
          for p in parts]
    # dropout: inference-mode identity
    return [_layer_norm(jnp.tanh(m), g, beta, inv_h) for m in ms]


def _res_tail(parts, shortcut, g, beta, inv_h):
    return [_layer_norm(jnp.tanh(s + p), g, beta, inv_h)
            for s, p in zip(shortcut, parts)]


def _classify_store(parts, cls_w_ref, cls_b_ref, out_ref, mm_dtype):
    outs = [jnp.dot(p.astype(mm_dtype), cls_w_ref[...],
                    preferred_element_type=jnp.float32) + cls_b_ref[0:1, :]
            for p in parts]
    row = 0
    for o in outs:
        out_ref[row:row + o.shape[0], :] = o.astype(out_ref.dtype)
        row += o.shape[0]


def _res_dnn_kernel(num_res, num_dnn, inv_h, n_split,
                    x_ref, prep_w_ref, prep_b_ref,
                    dnn_w_ref, dnn_b_ref, dnn_g_ref, dnn_beta_ref,
                    res_g_ref, res_beta_ref,
                    cls_w_ref, cls_b_ref,
                    out_ref):
    mm_dtype = prep_w_ref.dtype

    # prepare: Linear(input_size -> hidden); x already in matmul dtype.
    h = jnp.dot(x_ref[...], prep_w_ref[...],
                preferred_element_type=jnp.float32) + prep_b_ref[0:1, :]
    parts = _split_rows(h, n_split)

    for r in range(num_res):
        shortcut = parts
        for d in range(num_dnn):
            idx = r * num_dnn + d
            parts = _dnn_layer(parts, dnn_w_ref[idx],
                               dnn_b_ref[idx:idx + 1, :],
                               dnn_g_ref[idx:idx + 1, :],
                               dnn_beta_ref[idx:idx + 1, :],
                               inv_h, mm_dtype)
        parts = _res_tail(parts, shortcut,
                          res_g_ref[r:r + 1, :], res_beta_ref[r:r + 1, :], inv_h)

    _classify_store(parts, cls_w_ref, cls_b_ref, out_ref, mm_dtype)


def _res_dnn_kernel_stream(num_res, num_dnn, inv_h, n_split,
                           x_ref, prep_w_ref, prep_b_ref,
                           dnn_w_hbm, dnn_b_ref, dnn_g_ref, dnn_beta_ref,
                           res_g_ref, res_beta_ref,
                           cls_w_ref, cls_b_ref,
                           out_ref, wbuf_ref, wsem_ref):
    # dnn_w stays in HBM; one (H_pad, H_pad) layer is streamed at a time through a
    # double-buffered VMEM scratch, prefetching layer idx+1 during layer idx's matmuls.
    mm_dtype = prep_w_ref.dtype
    L = num_res * num_dnn

    def start_fetch(idx, slot):
        pltpu.make_async_copy(dnn_w_hbm.at[idx], wbuf_ref.at[slot],
                              wsem_ref.at[slot]).start()

    def wait_fetch(slot):
        pltpu.make_async_copy(dnn_w_hbm.at[0], wbuf_ref.at[slot],
                              wsem_ref.at[slot]).wait()

    start_fetch(0, 0)  # overlaps the prepare matmul below

    h = jnp.dot(x_ref[...], prep_w_ref[...],
                preferred_element_type=jnp.float32) + prep_b_ref[0:1, :]
    parts = _split_rows(h, n_split)

    for r in range(num_res):
        shortcut = parts
        for d in range(num_dnn):
            idx = r * num_dnn + d
            slot = idx & 1
            wait_fetch(slot)
            if idx + 1 < L:
                start_fetch(idx + 1, 1 - slot)
            parts = _dnn_layer(parts, wbuf_ref[slot],
                               dnn_b_ref[idx:idx + 1, :],
                               dnn_g_ref[idx:idx + 1, :],
                               dnn_beta_ref[idx:idx + 1, :],
                               inv_h, mm_dtype)
        parts = _res_tail(parts, shortcut,
                          res_g_ref[r:r + 1, :], res_beta_ref[r:r + 1, :], inv_h)

    _classify_store(parts, cls_w_ref, cls_b_ref, out_ref, mm_dtype)


def _full_resident_spec(arr):
    # Constant index_map across the grid -> a single VMEM buffer suffices.
    ndim = arr.ndim
    return pl.BlockSpec(arr.shape, lambda i, _nd=ndim: (0,) * _nd,
                        pipeline_mode=pl.Buffered(1))


def res_dnn_forward(x, params, *, num_res, num_dnn, tile_n=None,
                    matmul_dtype=jnp.bfloat16, out_dtype=jnp.float32,
                    force_stream=None):
    """x: (N, input_size) float32. params: dict of stacked (unpadded) weights."""
    N, I = x.shape
    H = params["prep_w"].shape[1]
    O = params["cls_w"].shape[1]
    L = num_res * num_dnn
    assert params["dnn_w"].shape[0] == L

    # Generation-aware VMEM budget / feature alignment.
    gen = _tpu_generation()
    if gen is not None and gen >= 7:
        vmem_cap = 56 << 20      # 64 MiB physical per TC; leave Mosaic headroom
        feat_align = 256         # 2x256x256 MXU
    elif gen == 6:
        vmem_cap = 104 << 20     # 128 MiB physical
        feat_align = 256
    elif gen == 5:
        vmem_cap = 104 << 20     # 128 MiB physical
        feat_align = 128         # 4x128x128 MXU
    else:
        vmem_cap = 64 << 20      # unknown / emulated: conservative
        feat_align = 128

    def pad_dim(d):
        p = _round_up(d, 128)
        if feat_align == 256 and p > 128 and p % 256 != 0:
            p = _round_up(p, 256)
        return p

    I_pad, H_pad, O_pad = pad_dim(I), pad_dim(H), pad_dim(O)

    f32 = jnp.float32
    mm_itemsize = jnp.dtype(matmul_dtype).itemsize
    out_itemsize = jnp.dtype(out_dtype).itemsize

    # Zero-pad params; matmul weights in matmul_dtype (bf16 halves resident VMEM + HBM traffic),
    # biases / LayerNorm params stay f32 (applied to the f32 accumulators).
    prep_w = jnp.pad(params["prep_w"], ((0, I_pad - I), (0, H_pad - H))).astype(matmul_dtype)
    prep_b = jnp.pad(params["prep_b"].reshape(1, H), ((0, 0), (0, H_pad - H))).astype(f32)
    dnn_w = jnp.pad(params["dnn_w"], ((0, 0), (0, H_pad - H), (0, H_pad - H))).astype(matmul_dtype)
    dnn_b = jnp.pad(params["dnn_b"], ((0, 0), (0, H_pad - H))).astype(f32)
    dnn_g = jnp.pad(params["dnn_g"], ((0, 0), (0, H_pad - H))).astype(f32)      # gamma pads = 0
    dnn_beta = jnp.pad(params["dnn_beta"], ((0, 0), (0, H_pad - H))).astype(f32)
    res_g = jnp.pad(params["res_g"], ((0, 0), (0, H_pad - H))).astype(f32)       # gamma pads = 0
    res_beta = jnp.pad(params["res_beta"], ((0, 0), (0, H_pad - H))).astype(f32)
    cls_w = jnp.pad(params["cls_w"], ((0, H_pad - H), (0, O_pad - O))).astype(matmul_dtype)
    cls_b = jnp.pad(params["cls_b"].reshape(1, O), ((0, 0), (0, O_pad - O))).astype(f32)

    small_weights = (prep_w, prep_b, dnn_b, dnn_g, dnn_beta, res_g, res_beta, cls_w, cls_b)
    dnn_w_bytes = int(dnn_w.size) * mm_itemsize
    small_bytes = sum(int(w.size) * w.dtype.itemsize for w in small_weights)
    resident_all = small_bytes + dnn_w_bytes

    # Stream dnn_w from HBM when full residency would squeeze this generation's VMEM budget.
    if force_stream is None:
        stream = resident_all + (8 << 20) > (vmem_cap * 3) // 4
    else:
        stream = bool(force_stream)
    stream_buf_bytes = 2 * H_pad * H_pad * mm_itemsize
    resident_bytes = small_bytes + (stream_buf_bytes if stream else dnn_w_bytes)

    # VMEM-aware row tile: ~5 live f32 (rows, H_pad) temporaries (h, shortcut, matmul result,
    # LN temporaries) + double-buffered x/out tiles.
    if tile_n is None:
        budget = max(vmem_cap - resident_bytes - (4 << 20), 2 << 20)
        per_row = 5 * H_pad * 4 + 2 * I_pad * mm_itemsize + 2 * O_pad * out_itemsize
        tile_n = max(16, min(budget // per_row, 1024))
    tile_n = int(max(8, min(int(tile_n), _round_up(N, 8))))
    if gen is not None and gen >= 7 and N >= 32:
        # 2 TensorCores on v7x: keep grid_n >= 2 so the "parallel" axis can shard across both.
        tile_n = min(tile_n, max(16, (_round_up(N, 16) // 2 // 16) * 16))
    if tile_n >= 16:
        tile_n = (tile_n // 16) * 16   # two sublane-aligned halves per tile
        n_split = 2
    else:
        tile_n = 8
        n_split = 1

    N_pad = _round_up(N, tile_n)
    grid_n = N_pad // tile_n

    # x in matmul dtype (halves HBM read + input VMEM buffer; it only feeds the bf16 MXU).
    x_p = jnp.pad(x, ((0, N_pad - N), (0, I_pad - I))).astype(matmul_dtype)

    act_bytes = 2 * tile_n * (I_pad * mm_itemsize + O_pad * out_itemsize)
    slack = 6 * tile_n * H_pad * 4 + (4 << 20)
    vmem_limit = int(min(vmem_cap, max(24 << 20, resident_bytes + act_bytes + slack)))

    flops = 2 * N_pad * (I_pad * H_pad + L * H_pad * H_pad + H_pad * O_pad)
    transcendentals = N_pad * H_pad * (L + num_res)          # tanh count
    bytes_accessed = (small_bytes + int(x_p.size) * mm_itemsize
                      + N_pad * O_pad * out_itemsize
                      + (grid_n if stream else 1) * dnn_w_bytes)

    in_specs = ([pl.BlockSpec((tile_n, I_pad), lambda i: (i, 0)),
                 _full_resident_spec(prep_w), _full_resident_spec(prep_b)]
                + [pl.BlockSpec(memory_space=pl.ANY) if stream
                   else _full_resident_spec(dnn_w)]
                + [_full_resident_spec(w) for w in
                   (dnn_b, dnn_g, dnn_beta, res_g, res_beta, cls_w, cls_b)])

    scratch_shapes = ((pltpu.VMEM((2, H_pad, H_pad), matmul_dtype),
                       pltpu.SemaphoreType.DMA((2,))) if stream else ())

    kernel_fn = _res_dnn_kernel_stream if stream else _res_dnn_kernel
    kernel = functools.partial(kernel_fn, num_res, num_dnn, float(1.0 / H), n_split)

    out_p = pl.pallas_call(
        kernel,
        out_shape=jax.ShapeDtypeStruct((N_pad, O_pad), out_dtype),
        grid_spec=pltpu.PrefetchScalarGridSpec(
            num_scalar_prefetch=0,
            grid=(grid_n,),
            in_specs=in_specs,
            out_specs=pl.BlockSpec((tile_n, O_pad), lambda i: (i, 0)),
            scratch_shapes=scratch_shapes),
        compiler_params=pltpu.CompilerParams(
            dimension_semantics=("parallel",),
            vmem_limit_bytes=vmem_limit),
        cost_estimate=pl.CostEstimate(
            flops=int(flops),
            transcendentals=int(transcendentals),
            bytes_accessed=int(bytes_accessed)),
    )(x_p, prep_w, prep_b, dnn_w, dnn_b, dnn_g, dnn_beta,
      res_g, res_beta, cls_w, cls_b)

    return out_p[:N, :O]


def make_params(key, input_size, hidden, output, num_res, num_dnn):
    ks = jax.random.split(key, 8)
    L = num_res * num_dnn
    return {
        "prep_w": 0.1 * jax.random.normal(ks[0], (input_size, hidden), jnp.float32),
        "prep_b": 0.1 * jax.random.normal(ks[1], (1, hidden), jnp.float32),
        "dnn_w": 0.1 * jax.random.normal(ks[2], (L, hidden, hidden), jnp.float32),
        "dnn_b": 0.1 * jax.random.normal(ks[3], (L, hidden), jnp.float32),
        "dnn_g": jnp.ones((L, hidden), jnp.float32)
                 + 0.05 * jax.random.normal(ks[4], (L, hidden), jnp.float32),
        "dnn_beta": 0.05 * jax.random.normal(ks[5], (L, hidden), jnp.float32),
        "res_g": jnp.ones((num_res, hidden), jnp.float32),
        "res_beta": jnp.zeros((num_res, hidden), jnp.float32),
        "cls_w": 0.1 * jax.random.normal(ks[6], (hidden, output), jnp.float32),
        "cls_b": 0.1 * jax.random.normal(ks[7], (1, output), jnp.float32),
    }


def res_dnn_reference(x, params, *, num_res, num_dnn):
    # Pure-f32 reference with exact nn.LayerNorm semantics.
    def ln(h, g, b):
        mu = jnp.mean(h, axis=-1, keepdims=True)
        var = jnp.mean((h - mu) ** 2, axis=-1, keepdims=True)
        return (h - mu) * jax.lax.rsqrt(var + LN_EPS) * g + b

    h = x @ params["prep_w"] + params["prep_b"]
    for r in range(num_res):
        sc = h
        for d in range(num_dnn):
            i = r * num_dnn + d
            h = h @ params["dnn_w"][i] + params["dnn_b"][i]
            h = jnp.tanh(h)
            h = ln(h, params["dnn_g"][i], params["dnn_beta"][i])
        h = sc + h
        h = jnp.tanh(h)
        h = ln(h, params["res_g"][r], params["res_beta"][r])
    return h @ params["cls_w"] + params["cls_b"]


if __name__ == "__main__":
    # Small shapes consistent with the module's forward (2D token/feature input).
    N, INPUT, HIDDEN, OUTPUT = 16, 16, 32, 8
    NUM_RES_DNN, NUM_DNN = 2, 2

    key = jax.random.PRNGKey(0)
    kx, kp = jax.random.split(key)
    x = jax.random.normal(kx, (N, INPUT), jnp.float32)
    params = make_params(kp, INPUT, HIDDEN, OUTPUT, NUM_RES_DNN, NUM_DNN)

    ref = res_dnn_reference(x, params, num_res=NUM_RES_DNN, num_dnn=NUM_DNN)
    # bf16 matmul operands (f32 accumulation) vs pure-f32 reference; tolerance scales with depth.
    tol = 1e-2 * (NUM_RES_DNN * NUM_DNN + NUM_RES_DNN + 2)

    # Path 1: fully-resident weights, tile_n=8 -> 2-step grid (exercises the x/out pipeline).
    out_res = res_dnn_forward(x, params, num_res=NUM_RES_DNN, num_dnn=NUM_DNN, tile_n=8)
    out_res = jax.block_until_ready(out_res)
    assert out_res.shape == (N, OUTPUT)
    err = float(jnp.max(jnp.abs(out_res - ref)))
    assert err < tol, f"resident path mismatch vs reference: max abs err {err}"

    # Path 2: dnn_w streamed from HBM (double-buffered DMA) + half-tile interleave (VMEM-derived
    # tile_n -> 16 rows, 2 halves).
    out_str = res_dnn_forward(x, params, num_res=NUM_RES_DNN, num_dnn=NUM_DNN,
                              force_stream=True)
    out_str = jax.block_until_ready(out_str)
    assert out_str.shape == (N, OUTPUT)
    err = float(jnp.max(jnp.abs(out_str - ref)))
    assert err < tol, f"streaming path mismatch vs reference: max abs err {err}"

    print("KERNEL_OK")
</pallas_src>

<mosaic_0001>
module attributes {stable_mosaic.version = 11 : i64} {
  func.func @_res_dnn_kernel(%arg0: i32, %arg1: memref<8x128xbf16, #tpu.memory_space<vmem>>, %arg2: memref<128x128xbf16, #tpu.memory_space<vmem>>, %arg3: memref<1x128xf32, #tpu.memory_space<vmem>>, %arg4: memref<4x128x128xbf16, #tpu.memory_space<vmem>>, %arg5: memref<4x128xf32, #tpu.memory_space<vmem>>, %arg6: memref<4x128xf32, #tpu.memory_space<vmem>>, %arg7: memref<4x128xf32, #tpu.memory_space<vmem>>, %arg8: memref<2x128xf32, #tpu.memory_space<vmem>>, %arg9: memref<2x128xf32, #tpu.memory_space<vmem>>, %arg10: memref<128x128xbf16, #tpu.memory_space<vmem>>, %arg11: memref<1x128xf32, #tpu.memory_space<vmem>>, %arg12: memref<8x128xf32, #tpu.memory_space<vmem>>) attributes {dimension_semantics = [#tpu.dimension_semantics<parallel>], iteration_bounds = array<i64: 2>, scalar_prefetch = 0 : i64, scratch_operands = 0 : i64, tpu.core_type = #tpu.core_type<tc>, window_params = [{transform_indices = @transform_0, window_bounds = array<i64: 8, 128>}, {pipeline_mode = #tpu.pipeline_mode<synchronous>, transform_indices = @transform_1, window_bounds = array<i64: 128, 128>}, {pipeline_mode = #tpu.pipeline_mode<synchronous>, transform_indices = @transform_2, window_bounds = array<i64: 1, 128>}, {pipeline_mode = #tpu.pipeline_mode<synchronous>, transform_indices = @transform_3, window_bounds = array<i64: 4, 128, 128>}, {pipeline_mode = #tpu.pipeline_mode<synchronous>, transform_indices = @transform_4, window_bounds = array<i64: 4, 128>}, {pipeline_mode = #tpu.pipeline_mode<synchronous>, transform_indices = @transform_5, window_bounds = array<i64: 4, 128>}, {pipeline_mode = #tpu.pipeline_mode<synchronous>, transform_indices = @transform_6, window_bounds = array<i64: 4, 128>}, {pipeline_mode = #tpu.pipeline_mode<synchronous>, transform_indices = @transform_7, window_bounds = array<i64: 2, 128>}, {pipeline_mode = #tpu.pipeline_mode<synchronous>, transform_indices = @transform_8, window_bounds = array<i64: 2, 128>}, {pipeline_mode = #tpu.pipeline_mode<synchronous>, transform_indices = @transform_9, window_bounds = array<i64: 128, 128>}, {pipeline_mode = #tpu.pipeline_mode<synchronous>, transform_indices = @transform_10, window_bounds = array<i64: 1, 128>}, {transform_indices = @transform_11, window_bounds = array<i64: 8, 128>}]} {
    %c0 = arith.constant 0 : index
    %c0_0 = arith.constant 0 : index
    %0 = vector.load %arg1[%c0, %c0_0] : memref<8x128xbf16, #tpu.memory_space<vmem>>, vector<8x128xbf16>
    %c0_1 = arith.constant 0 : index
    %c0_2 = arith.constant 0 : index
    %1 = vector.load %arg2[%c0_1, %c0_2] : memref<128x128xbf16, #tpu.memory_space<vmem>>, vector<128x128xbf16>
    %cst = arith.constant dense<0.000000e+00> : vector<8x128xf32>
    %2 = tpu.matmul %0, %1, %cst {dimension_numbers = #tpu.dot_dimension_numbers<[1], [0], [0], [1], [0, 0, 1, 1], [], []>} : vector<8x128xbf16>, vector<128x128xbf16>, vector<8x128xf32> -> vector<8x128xf32>
    %c0_3 = arith.constant 0 : index
    %c0_4 = arith.constant 0 : index
    %3 = vector.load %arg3[%c0_3, %c0_4] : memref<1x128xf32, #tpu.memory_space<vmem>>, vector<1x128xf32>
    %4 = vector.broadcast %3 : vector<1x128xf32> to vector<8x128xf32>
    %5 = arith.addf %2, %4 : vector<8x128xf32>
    %c0_5 = arith.constant 0 : index
    %c0_6 = arith.constant 0 : index
    %c0_7 = arith.constant 0 : index
    %6 = vector.load %arg4[%c0_5, %c0_6, %c0_7] : memref<4x128x128xbf16, #tpu.memory_space<vmem>>, vector<1x128x128xbf16>
    %7 = vector.shape_cast %6 : vector<1x128x128xbf16> to vector<128x128xbf16>
    %c0_8 = arith.constant 0 : index
    %c0_9 = arith.constant 0 : index
    %8 = vector.load %arg5[%c0_8, %c0_9] : memref<4x128xf32, #tpu.memory_space<vmem>>, vector<1x128xf32>
    %c0_10 = arith.constant 0 : index
    %c0_11 = arith.constant 0 : index
    %9 = vector.load %arg6[%c0_10, %c0_11] : memref<4x128xf32, #tpu.memory_space<vmem>>, vector<1x128xf32>
    %c0_12 = arith.constant 0 : index
    %c0_13 = arith.constant 0 : index
    %10 = vector.load %arg7[%c0_12, %c0_13] : memref<4x128xf32, #tpu.memory_space<vmem>>, vector<1x128xf32>
    %11 = arith.truncf %5 : vector<8x128xf32> to vector<8x128xbf16>
    %cst_14 = arith.constant dense<0.000000e+00> : vector<8x128xf32>
    %12 = tpu.matmul %11, %7, %cst_14 {dimension_numbers = #tpu.dot_dimension_numbers<[1], [0], [0], [1], [0, 0, 1, 1], [], []>} : vector<8x128xbf16>, vector<128x128xbf16>, vector<8x128xf32> -> vector<8x128xf32>
    %13 = vector.broadcast %8 : vector<1x128xf32> to vector<8x128xf32>
    %14 = arith.addf %12, %13 : vector<8x128xf32>
    %15 = math.tanh %14 : vector<8x128xf32>
    %cst_15 = arith.constant dense<0.000000e+00> : vector<8xf32>
    %16 = vector.multi_reduction <add>, %15, %cst_15 [1] : vector<8x128xf32> to vector<8xf32>
    %17 = vector.shape_cast %16 : vector<8xf32> to vector<8x1xf32>
    %cst_16 = arith.constant 3.125000e-02 : f32
    %18 = vector.broadcast %cst_16 : f32 to vector<8x1xf32>
    %19 = arith.mulf %17, %18 : vector<8x1xf32>
    %20 = arith.mulf %15, %15 : vector<8x128xf32>
    %cst_17 = arith.constant dense<0.000000e+00> : vector<8xf32>
    %21 = vector.multi_reduction <add>, %20, %cst_17 [1] : vector<8x128xf32> to vector<8xf32>
    %22 = vector.shape_cast %21 : vector<8xf32> to vector<8x1xf32>
    %cst_18 = arith.constant 3.125000e-02 : f32
    %23 = vector.broadcast %cst_18 : f32 to vector<8x1xf32>
    %24 = arith.mulf %22, %23 : vector<8x1xf32>
    %25 = arith.mulf %19, %19 : vector<8x1xf32>
    %26 = arith.subf %24, %25 : vector<8x1xf32>
    %cst_19 = arith.constant 0.000000e+00 : f32
    %27 = vector.broadcast %cst_19 : f32 to vector<8x1xf32>
    %28 = arith.maximumf %26, %27 : vector<8x1xf32>
    %29 = vector.broadcast %19 : vector<8x1xf32> to vector<8x128xf32>
    %30 = arith.subf %15, %29 : vector<8x128xf32>
    %cst_20 = arith.constant 9.99999974E-6 : f32
    %31 = vector.broadcast %cst_20 : f32 to vector<8x1xf32>
    %32 = arith.addf %28, %31 : vector<8x1xf32>
    %33 = math.rsqrt %32 : vector<8x1xf32>
    %34 = vector.broadcast %33 : vector<8x1xf32> to vector<8x128xf32>
    %35 = arith.mulf %30, %34 : vector<8x128xf32>
    %36 = vector.broadcast %9 : vector<1x128xf32> to vector<8x128xf32>
    %37 = arith.mulf %35, %36 : vector<8x128xf32>
    %38 = vector.broadcast %10 : vector<1x128xf32> to vector<8x128xf32>
    %39 = arith.addf %37, %38 : vector<8x128xf32>
    %c1 = arith.constant 1 : index
    %c0_21 = arith.constant 0 : index
    %c0_22 = arith.constant 0 : index
    %40 = vector.load %arg4[%c1, %c0_21, %c0_22] : memref<4x128x128xbf16, #tpu.memory_space<vmem>>, vector<1x128x128xbf16>
    %41 = vector.shape_cast %40 : vector<1x128x128xbf16> to vector<128x128xbf16>
    %c1_23 = arith.constant 1 : index
    %c0_24 = arith.constant 0 : index
    %42 = vector.load %arg5[%c1_23, %c0_24] : memref<4x128xf32, #tpu.memory_space<vmem>>, vector<1x128xf32>
    %c1_25 = arith.constant 1 : index
    %c0_26 = arith.constant 0 : index
    %43 = vector.load %arg6[%c1_25, %c0_26] : memref<4x128xf32, #tpu.memory_space<vmem>>, vector<1x128xf32>
    %c1_27 = arith.constant 1 : index
    %c0_28 = arith.constant 0 : index
    %44 = vector.load %arg7[%c1_27, %c0_28] : memref<4x128xf32, #tpu.memory_space<vmem>>, vector<1x128xf32>
    %45 = arith.truncf %39 : vector<8x128xf32> to vector<8x128xbf16>
    %cst_29 = arith.constant dense<0.000000e+00> : vector<8x128xf32>
    %46 = tpu.matmul %45, %41, %cst_29 {dimension_numbers = #tpu.dot_dimension_numbers<[1], [0], [0], [1], [0, 0, 1, 1], [], []>} : vector<8x128xbf16>, vector<128x128xbf16>, vector<8x128xf32> -> vector<8x128xf32>
    %47 = vector.broadcast %42 : vector<1x128xf32> to vector<8x128xf32>
    %48 = arith.addf %46, %47 : vector<8x128xf32>
    %49 = math.tanh %48 : vector<8x128xf32>
    %cst_30 = arith.constant dense<0.000000e+00> : vector<8xf32>
    %50 = vector.multi_reduction <add>, %49, %cst_30 [1] : vector<8x128xf32> to vector<8xf32>
    %51 = vector.shape_cast %50 : vector<8xf32> to vector<8x1xf32>
    %cst_31 = arith.constant 3.125000e-02 : f32
    %52 = vector.broadcast %cst_31 : f32 to vector<8x1xf32>
    %53 = arith.mulf %51, %52 : vector<8x1xf32>
    %54 = arith.mulf %49, %49 : vector<8x128xf32>
    %cst_32 = arith.constant dense<0.000000e+00> : vector<8xf32>
    %55 = vector.multi_reduction <add>, %54, %cst_32 [1] : vector<8x128xf32> to vector<8xf32>
    %56 = vector.shape_cast %55 : vector<8xf32> to vector<8x1xf32>
    %cst_33 = arith.constant 3.125000e-02 : f32
    %57 = vector.broadcast %cst_33 : f32 to vector<8x1xf32>
    %58 = arith.mulf %56, %57 : vector<8x1xf32>
    %59 = arith.mulf %53, %53 : vector<8x1xf32>
    %60 = arith.subf %58, %59 : vector<8x1xf32>
    %cst_34 = arith.constant 0.000000e+00 : f32
    %61 = vector.broadcast %cst_34 : f32 to vector<8x1xf32>
    %62 = arith.maximumf %60, %61 : vector<8x1xf32>
    %63 = vector.broadcast %53 : vector<8x1xf32> to vector<8x128xf32>
    %64 = arith.subf %49, %63 : vector<8x128xf32>
    %cst_35 = arith.constant 9.99999974E-6 : f32
    %65 = vector.broadcast %cst_35 : f32 to vector<8x1xf32>
    %66 = arith.addf %62, %65 : vector<8x1xf32>
    %67 = math.rsqrt %66 : vector<8x1xf32>
    %68 = vector.broadcast %67 : vector<8x1xf32> to vector<8x128xf32>
    %69 = arith.mulf %64, %68 : vector<8x128xf32>
    %70 = vector.broadcast %43 : vector<1x128xf32> to vector<8x128xf32>
    %71 = arith.mulf %69, %70 : vector<8x128xf32>
    %72 = vector.broadcast %44 : vector<1x128xf32> to vector<8x128xf32>
    %73 = arith.addf %71, %72 : vector<8x128xf32>
    %c0_36 = arith.constant 0 : index
    %c0_37 = arith.constant 0 : index
    %74 = vector.load %arg8[%c0_36, %c0_37] : memref<2x128xf32, #tpu.memory_space<vmem>>, vector<1x128xf32>
    %c0_38 = arith.constant 0 : index
    %c0_39 = arith.constant 0 : index
    %75 = vector.load %arg9[%c0_38, %c0_39] : memref<2x128xf32, #tpu.memory_space<vmem>>, vector<1x128xf32>
    %76 = arith.addf %5, %73 : vector<8x128xf32>
    %77 = math.tanh %76 : vector<8x128xf32>
    %cst_40 = arith.constant dense<0.000000e+00> : vector<8xf32>
    %78 = vector.multi_reduction <add>, %77, %cst_40 [1] : vector<8x128xf32> to vector<8xf32>
    %79 = vector.shape_cast %78 : vector<8xf32> to vector<8x1xf32>
    %cst_41 = arith.constant 3.125000e-02 : f32
    %80 = vector.broadcast %cst_41 : f32 to vector<8x1xf32>
    %81 = arith.mulf %79, %80 : vector<8x1xf32>
    %82 = arith.mulf %77, %77 : vector<8x128xf32>
    %cst_42 = arith.constant dense<0.000000e+00> : vector<8xf32>
    %83 = vector.multi_reduction <add>, %82, %cst_42 [1] : vector<8x128xf32> to vector<8xf32>
    %84 = vector.shape_cast %83 : vector<8xf32> to vector<8x1xf32>
    %cst_43 = arith.constant 3.125000e-02 : f32
    %85 = vector.broadcast %cst_43 : f32 to vector<8x1xf32>
    %86 = arith.mulf %84, %85 : vector<8x1xf32>
    %87 = arith.mulf %81, %81 : vector<8x1xf32>
    %88 = arith.subf %86, %87 : vector<8x1xf32>
    %cst_44 = arith.constant 0.000000e+00 : f32
    %89 = vector.broadcast %cst_44 : f32 to vector<8x1xf32>
    %90 = arith.maximumf %88, %89 : vector<8x1xf32>
    %91 = vector.broadcast %81 : vector<8x1xf32> to vector<8x128xf32>
    %92 = arith.subf %77, %91 : vector<8x128xf32>
    %cst_45 = arith.constant 9.99999974E-6 : f32
    %93 = vector.broadcast %cst_45 : f32 to vector<8x1xf32>
    %94 = arith.addf %90, %93 : vector<8x1xf32>
    %95 = math.rsqrt %94 : vector<8x1xf32>
    %96 = vector.broadcast %95 : vector<8x1xf32> to vector<8x128xf32>
    %97 = arith.mulf %92, %96 : vector<8x128xf32>
    %98 = vector.broadcast %74 : vector<1x128xf32> to vector<8x128xf32>
    %99 = arith.mulf %97, %98 : vector<8x128xf32>
    %100 = vector.broadcast %75 : vector<1x128xf32> to vector<8x128xf32>
    %101 = arith.addf %99, %100 : vector<8x128xf32>
    %c2 = arith.constant 2 : index
    %c0_46 = arith.constant 0 : index
    %c0_47 = arith.constant 0 : index
    %102 = vector.load %arg4[%c2, %c0_46, %c0_47] : memref<4x128x128xbf16, #tpu.memory_space<vmem>>, vector<1x128x128xbf16>
    %103 = vector.shape_cast %102 : vector<1x128x128xbf16> to vector<128x128xbf16>
    %c2_48 = arith.constant 2 : index
    %c0_49 = arith.constant 0 : index
    %104 = vector.load %arg5[%c2_48, %c0_49] : memref<4x128xf32, #tpu.memory_space<vmem>>, vector<1x128xf32>
    %c2_50 = arith.constant 2 : index
    %c0_51 = arith.constant 0 : index
    %105 = vector.load %arg6[%c2_50, %c0_51] : memref<4x128xf32, #tpu.memory_space<vmem>>, vector<1x128xf32>
    %c2_52 = arith.constant 2 : index
    %c0_53 = arith.constant 0 : index
    %106 = vector.load %arg7[%c2_52, %c0_53] : memref<4x128xf32, #tpu.memory_space<vmem>>, vector<1x128xf32>
    %107 = arith.truncf %101 : vector<8x128xf32> to vector<8x128xbf16>
    %cst_54 = arith.constant dense<0.000000e+00> : vector<8x128xf32>
    %108 = tpu.matmul %107, %103, %cst_54 {dimension_numbers = #tpu.dot_dimension_numbers<[1], [0], [0], [1], [0, 0, 1, 1], [], []>} : vector<8x128xbf16>, vector<128x128xbf16>, vector<8x128xf32> -> vector<8x128xf32>
    %109 = vector.broadcast %104 : vector<1x128xf32> to vector<8x128xf32>
    %110 = arith.addf %108, %109 : vector<8x128xf32>
    %111 = math.tanh %110 : vector<8x128xf32>
    %cst_55 = arith.constant dense<0.000000e+00> : vector<8xf32>
    %112 = vector.multi_reduction <add>, %111, %cst_55 [1] : vector<8x128xf32> to vector<8xf32>
    %113 = vector.shape_cast %112 : vector<8xf32> to vector<8x1xf32>
    %cst_56 = arith.constant 3.125000e-02 : f32
    %114 = vector.broadcast %cst_56 : f32 to vector<8x1xf32>
    %115 = arith.mulf %113, %114 : vector<8x1xf32>
    %116 = arith.mulf %111, %111 : vector<8x128xf32>
    %cst_57 = arith.constant dense<0.000000e+00> : vector<8xf32>
    %117 = vector.multi_reduction <add>, %116, %cst_57 [1] : vector<8x128xf32> to vector<8xf32>
    %118 = vector.shape_cast %117 : vector<8xf32> to vector<8x1xf32>
    %cst_58 = arith.constant 3.125000e-02 : f32
    %119 = vector.broadcast %cst_58 : f32 to vector<8x1xf32>
    %120 = arith.mulf %118, %119 : vector<8x1xf32>
    %121 = arith.mulf %115, %115 : vector<8x1xf32>
    %122 = arith.subf %120, %121 : vector<8x1xf32>
    %cst_59 = arith.constant 0.000000e+00 : f32
    %123 = vector.broadcast %cst_59 : f32 to vector<8x1xf32>
    %124 = arith.maximumf %122, %123 : vector<8x1xf32>
    %125 = vector.broadcast %115 : vector<8x1xf32> to vector<8x128xf32>
    %126 = arith.subf %111, %125 : vector<8x128xf32>
    %cst_60 = arith.constant 9.99999974E-6 : f32
    %127 = vector.broadcast %cst_60 : f32 to vector<8x1xf32>
    %128 = arith.addf %124, %127 : vector<8x1xf32>
    %129 = math.rsqrt %128 : vector<8x1xf32>
    %130 = vector.broadcast %129 : vector<8x1xf32> to vector<8x128xf32>
    %131 = arith.mulf %126, %130 : vector<8x128xf32>
    %132 = vector.broadcast %105 : vector<1x128xf32> to vector<8x128xf32>
    %133 = arith.mulf %131, %132 : vector<8x128xf32>
    %134 = vector.broadcast %106 : vector<1x128xf32> to vector<8x128xf32>
    %135 = arith.addf %133, %134 : vector<8x128xf32>
    %c3 = arith.constant 3 : index
    %c0_61 = arith.constant 0 : index
    %c0_62 = arith.constant 0 : index
    %136 = vector.load %arg4[%c3, %c0_61, %c0_62] : memref<4x128x128xbf16, #tpu.memory_space<vmem>>, vector<1x128x128xbf16>
    %137 = vector.shape_cast %136 : vector<1x128x128xbf16> to vector<128x128xbf16>
    %c3_63 = arith.constant 3 : index
    %c0_64 = arith.constant 0 : index
    %138 = vector.load %arg5[%c3_63, %c0_64] : memref<4x128xf32, #tpu.memory_space<vmem>>, vector<1x128xf32>
    %c3_65 = arith.constant 3 : index
    %c0_66 = arith.constant 0 : index
    %139 = vector.load %arg6[%c3_65, %c0_66] : memref<4x128xf32, #tpu.memory_space<vmem>>, vector<1x128xf32>
    %c3_67 = arith.constant 3 : index
    %c0_68 = arith.constant 0 : index
    %140 = vector.load %arg7[%c3_67, %c0_68] : memref<4x128xf32, #tpu.memory_space<vmem>>, vector<1x128xf32>
    %141 = arith.truncf %135 : vector<8x128xf32> to vector<8x128xbf16>
    %cst_69 = arith.constant dense<0.000000e+00> : vector<8x128xf32>
    %142 = tpu.matmul %141, %137, %cst_69 {dimension_numbers = #tpu.dot_dimension_numbers<[1], [0], [0], [1], [0, 0, 1, 1], [], []>} : vector<8x128xbf16>, vector<128x128xbf16>, vector<8x128xf32> -> vector<8x128xf32>
    %143 = vector.broadcast %138 : vector<1x128xf32> to vector<8x128xf32>
    %144 = arith.addf %142, %143 : vector<8x128xf32>
    %145 = math.tanh %144 : vector<8x128xf32>
    %cst_70 = arith.constant dense<0.000000e+00> : vector<8xf32>
    %146 = vector.multi_reduction <add>, %145, %cst_70 [1] : vector<8x128xf32> to vector<8xf32>
    %147 = vector.shape_cast %146 : vector<8xf32> to vector<8x1xf32>
    %cst_71 = arith.constant 3.125000e-02 : f32
    %148 = vector.broadcast %cst_71 : f32 to vector<8x1xf32>
    %149 = arith.mulf %147, %148 : vector<8x1xf32>
    %150 = arith.mulf %145, %145 : vector<8x128xf32>
    %cst_72 = arith.constant dense<0.000000e+00> : vector<8xf32>
    %151 = vector.multi_reduction <add>, %150, %cst_72 [1] : vector<8x128xf32> to vector<8xf32>
    %152 = vector.shape_cast %151 : vector<8xf32> to vector<8x1xf32>
    %cst_73 = arith.constant 3.125000e-02 : f32
    %153 = vector.broadcast %cst_73 : f32 to vector<8x1xf32>
    %154 = arith.mulf %152, %153 : vector<8x1xf32>
    %155 = arith.mulf %149, %149 : vector<8x1xf32>
    %156 = arith.subf %154, %155 : vector<8x1xf32>
    %cst_74 = arith.constant 0.000000e+00 : f32
    %157 = vector.broadcast %cst_74 : f32 to vector<8x1xf32>
    %158 = arith.maximumf %156, %157 : vector<8x1xf32>
    %159 = vector.broadcast %149 : vector<8x1xf32> to vector<8x128xf32>
    %160 = arith.subf %145, %159 : vector<8x128xf32>
    %cst_75 = arith.constant 9.99999974E-6 : f32
    %161 = vector.broadcast %cst_75 : f32 to vector<8x1xf32>
    %162 = arith.addf %158, %161 : vector<8x1xf32>
    %163 = math.rsqrt %162 : vector<8x1xf32>
    %164 = vector.broadcast %163 : vector<8x1xf32> to vector<8x128xf32>
    %165 = arith.mulf %160, %164 : vector<8x128xf32>
    %166 = vector.broadcast %139 : vector<1x128xf32> to vector<8x128xf32>
    %167 = arith.mulf %165, %166 : vector<8x128xf32>
    %168 = vector.broadcast %140 : vector<1x128xf32> to vector<8x128xf32>
    %169 = arith.addf %167, %168 : vector<8x128xf32>
    %c1_76 = arith.constant 1 : index
    %c0_77 = arith.constant 0 : index
    %170 = vector.load %arg8[%c1_76, %c0_77] : memref<2x128xf32, #tpu.memory_space<vmem>>, vector<1x128xf32>
    %c1_78 = arith.constant 1 : index
    %c0_79 = arith.constant 0 : index
    %171 = vector.load %arg9[%c1_78, %c0_79] : memref<2x128xf32, #tpu.memory_space<vmem>>, vector<1x128xf32>
    %172 = arith.addf %101, %169 : vector<8x128xf32>
    %173 = math.tanh %172 : vector<8x128xf32>
    %cst_80 = arith.constant dense<0.000000e+00> : vector<8xf32>
    %174 = vector.multi_reduction <add>, %173, %cst_80 [1] : vector<8x128xf32> to vector<8xf32>
    %175 = vector.shape_cast %174 : vector<8xf32> to vector<8x1xf32>
    %cst_81 = arith.constant 3.125000e-02 : f32
    %176 = vector.broadcast %cst_81 : f32 to vector<8x1xf32>
    %177 = arith.mulf %175, %176 : vector<8x1xf32>
    %178 = arith.mulf %173, %173 : vector<8x128xf32>
    %cst_82 = arith.constant dense<0.000000e+00> : vector<8xf32>
    %179 = vector.multi_reduction <add>, %178, %cst_82 [1] : vector<8x128xf32> to vector<8xf32>
    %180 = vector.shape_cast %179 : vector<8xf32> to vector<8x1xf32>
    %cst_83 = arith.constant 3.125000e-02 : f32
    %181 = vector.broadcast %cst_83 : f32 to vector<8x1xf32>
    %182 = arith.mulf %180, %181 : vector<8x1xf32>
    %183 = arith.mulf %177, %177 : vector<8x1xf32>
    %184 = arith.subf %182, %183 : vector<8x1xf32>
    %cst_84 = arith.constant 0.000000e+00 : f32
    %185 = vector.broadcast %cst_84 : f32 to vector<8x1xf32>
    %186 = arith.maximumf %184, %185 : vector<8x1xf32>
    %187 = vector.broadcast %177 : vector<8x1xf32> to vector<8x128xf32>
    %188 = arith.subf %173, %187 : vector<8x128xf32>
    %cst_85 = arith.constant 9.99999974E-6 : f32
    %189 = vector.broadcast %cst_85 : f32 to vector<8x1xf32>
    %190 = arith.addf %186, %189 : vector<8x1xf32>
    %191 = math.rsqrt %190 : vector<8x1xf32>
    %192 = vector.broadcast %191 : vector<8x1xf32> to vector<8x128xf32>
    %193 = arith.mulf %188, %192 : vector<8x128xf32>
    %194 = vector.broadcast %170 : vector<1x128xf32> to vector<8x128xf32>
    %195 = arith.mulf %193, %194 : vector<8x128xf32>
    %196 = vector.broadcast %171 : vector<1x128xf32> to vector<8x128xf32>
    %197 = arith.addf %195, %196 : vector<8x128xf32>
    %198 = arith.truncf %197 : vector<8x128xf32> to vector<8x128xbf16>
    %c0_86 = arith.constant 0 : index
    %c0_87 = arith.constant 0 : index
    %199 = vector.load %arg10[%c0_86, %c0_87] : memref<128x128xbf16, #tpu.memory_space<vmem>>, vector<128x128xbf16>
    %cst_88 = arith.constant dense<0.000000e+00> : vector<8x128xf32>
    %200 = tpu.matmul %198, %199, %cst_88 {dimension_numbers = #tpu.dot_dimension_numbers<[1], [0], [0], [1], [0, 0, 1, 1], [], []>} : vector<8x128xbf16>, vector<128x128xbf16>, vector<8x128xf32> -> vector<8x128xf32>
    %c0_89 = arith.constant 0 : index
    %c0_90 = arith.constant 0 : index
    %201 = vector.load %arg11[%c0_89, %c0_90] : memref<1x128xf32, #tpu.memory_space<vmem>>, vector<1x128xf32>
    %202 = vector.broadcast %201 : vector<1x128xf32> to vector<8x128xf32>
    %203 = arith.addf %200, %202 : vector<8x128xf32>
    %c0_91 = arith.constant 0 : index
    %c0_92 = arith.constant 0 : index
    %204 = vector.load %arg12[%c0_91, %c0_92] : memref<8x128xf32, #tpu.memory_space<vmem>>, vector<8x128xf32>
    tpu.vector_store %arg12[%c0_91, %c0_92], %203 {strides = array<i32>} : memref<8x128xf32, #tpu.memory_space<vmem>>, vector<8x128xf32>,
    return
  }
  func.func @transform_0(%arg0: i32) -> (i32, i32) {
    %c0_i32 = arith.constant 0 : i32
    %c0_i32_0 = arith.constant 0 : i32
    return %arg0, %c0_i32 : i32, i32
  }
  func.func @transform_1(%arg0: i32) -> (i32, i32) {
    %c0_i32 = arith.constant 0 : i32
    %c0_i32_0 = arith.constant 0 : i32
    %c0_i32_1 = arith.constant 0 : i32
    return %c0_i32, %c0_i32_0 : i32, i32
  }
  func.func @transform_2(%arg0: i32) -> (i32, i32) {
    %c0_i32 = arith.constant 0 : i32
    %c0_i32_0 = arith.constant 0 : i32
    %c0_i32_1 = arith.constant 0 : i32
    return %c0_i32, %c0_i32_0 : i32, i32
  }
  func.func @transform_3(%arg0: i32) -> (i32, i32, i32) {
    %c0_i32 = arith.constant 0 : i32
    %c0_i32_0 = arith.constant 0 : i32
    %c0_i32_1 = arith.constant 0 : i32
    %c0_i32_2 = arith.constant 0 : i32
    return %c0_i32, %c0_i32_0, %c0_i32_1 : i32, i32, i32
  }
  func.func @transform_4(%arg0: i32) -> (i32, i32) {
    %c0_i32 = arith.constant 0 : i32
    %c0_i32_0 = arith.constant 0 : i32
    %c0_i32_1 = arith.constant 0 : i32
    return %c0_i32, %c0_i32_0 : i32, i32
  }
  func.func @transform_5(%arg0: i32) -> (i32, i32) {
    %c0_i32 = arith.constant 0 : i32
    %c0_i32_0 = arith.constant 0 : i32
    %c0_i32_1 = arith.constant 0 : i32
    return %c0_i32, %c0_i32_0 : i32, i32
  }
  func.func @transform_6(%arg0: i32) -> (i32, i32) {
    %c0_i32 = arith.constant 0 : i32
    %c0_i32_0 = arith.constant 0 : i32
    %c0_i32_1 = arith.constant 0 : i32
    return %c0_i32, %c0_i32_0 : i32, i32
  }
  func.func @transform_7(%arg0: i32) -> (i32, i32) {
    %c0_i32 = arith.constant 0 : i32
    %c0_i32_0 = arith.constant 0 : i32
    %c0_i32_1 = arith.constant 0 : i32
    return %c0_i32, %c0_i32_0 : i32, i32
  }
  func.func @transform_8(%arg0: i32) -> (i32, i32) {
    %c0_i32 = arith.constant 0 : i32
    %c0_i32_0 = arith.constant 0 : i32
    %c0_i32_1 = arith.constant 0 : i32
    return %c0_i32, %c0_i32_0 : i32, i32
  }
  func.func @transform_9(%arg0: i32) -> (i32, i32) {
    %c0_i32 = arith.constant 0 : i32
    %c0_i32_0 = arith.constant 0 : i32
    %c0_i32_1 = arith.constant 0 : i32
    return %c0_i32, %c0_i32_0 : i32, i32
  }
  func.func @transform_10(%arg0: i32) -> (i32, i32) {
    %c0_i32 = arith.constant 0 : i32
    %c0_i32_0 = arith.constant 0 : i32
    %c0_i32_1 = arith.constant 0 : i32
    return %c0_i32, %c0_i32_0 : i32, i32
  }
  func.func @transform_11(%arg0: i32) -> (i32, i32) {
    %c0_i32 = arith.constant 0 : i32
    %c0_i32_0 = arith.constant 0 : i32
    return %arg0, %c0_i32 : i32, i32
  }
}

</mosaic_0001>

<llo_original>
// kernel: tpu_custom_call.1
$region0: #{tpu_custom_call.1}
  #allocation0 [shape = 'u32[]', space=smem, size = 0x4, offset = 0x4, fixed_abs, tag = 'smem constant byte address 0x4 - core index']
  #allocation1 [shape = 'u32[144,128]{1,0:T(1,128)}', space=vmem, size = 0x12000, scoped, tag = 'internal scratch']
  %s0 = inlined_call_operand.hbm [shape: bf16[16,128], index: 0, kind: input, shape index: {}]
  %s1 = inlined_call_operand.hbm [shape: bf16[128,128], index: 1, kind: input, shape index: {}]
  %s2 = inlined_call_operand.vmem [shape: f32[1,128], index: 2, kind: input, shape index: {}]
  %s3 = inlined_call_operand.hbm [shape: bf16[4,128,128], index: 3, kind: input, shape index: {}]
  %s4 = inlined_call_operand.vmem [shape: f32[4,128], index: 4, kind: input, shape index: {}]
  %s5 = inlined_call_operand.vmem [shape: f32[4,128], index: 5, kind: input, shape index: {}]
  %s6 = inlined_call_operand.vmem [shape: f32[4,128], index: 6, kind: input, shape index: {}]
  %s7 = inlined_call_operand.vmem [shape: f32[2,128], index: 7, kind: input, shape index: {}]
  %s8 = inlined_call_operand.vmem [shape: f32[2,128], index: 8, kind: input, shape index: {}]
  %s9 = inlined_call_operand.hbm [shape: bf16[128,128], index: 9, kind: input, shape index: {}]
  %s10 = inlined_call_operand.vmem [shape: f32[1,128], index: 10, kind: input, shape index: {}]
  %s11 = inlined_call_operand.hbm [shape: f32[16,128], index: 11, kind: output, shape index: {}]
  %s12 = sld [smem:[#allocation0]]
  $region93: #{tpu_custom_call.1} parent=0
    _
  %s14 = ssub.s32 1, %s12
  %s15 = scalar_select 0, %s14, %s12
  $region1: #{tpu_custom_call.1} parent=0
    #allocation2 [shape = 'u8[4096]{0}', space=vmem, size = 0x1000, scoped, tag = 'input window, operand 0']
    #allocation3 [shape = 's32[2]{0}', space=sflag, size = 0x8, scoped, tag = 'scoped memory for tpu_custom_call.1']
    #allocation4 [shape = 's32[2]{0}', space=sflag, size = 0x8, scoped, tag = 'scoped memory for tpu_custom_call.1']
    #allocation5 [shape = 'u8[32768]{0}', space=vmem, size = 0x8000, scoped, tag = 'input window, operand 1, single buffered']
    #allocation6 [shape = 's32[1]{0}', space=sflag, size = 0x4, scoped, tag = 'scoped memory for tpu_custom_call.1']
    #allocation7 [shape = 'u8[131072]{0}', space=vmem, size = 0x20000, scoped, tag = 'input window, operand 3, single buffered']
    #allocation8 [shape = 'u8[32768]{0}', space=vmem, size = 0x8000, scoped, tag = 'input window, operand 9, single buffered']
    #allocation9 [shape = 's32[1]{0}', space=sflag, size = 0x4, scoped, tag = 'scoped memory for tpu_custom_call.1']
    #allocation10 [shape = 'u8[8192]{0}', space=vmem, size = 0x2000, scoped, tag = 'output window, operand 0']
    %16 = vsyncpa [#allocation3], 0
    %s17 = scalar_lea.sflag [#allocation3], 1
    %18 = vsyncpa %s17, 0
    %19 = vsyncpa [#allocation6], 0
    %20 = vsyncpa [#allocation9], 0
    %21 = vsyncpa [#allocation4], 0
    %s22 = scalar_lea.sflag [#allocation4], 1
    %23 = vsyncpa %s22, 0
    loop: start=0, step=1, limit=4
    $region2: #{tpu_custom_call.1} parent=1 // loop_pre_header
      _
    $region3: #{tpu_custom_call.1} parent=1 // loop_header
      %s25 = sphi 0, %s29
      %p26 = scmp.ge.s32.totalorder %s25, 4
      %s35 = sphi 0, %s37
      %s38 = sphi 0, %s35
      %s39 = sphi 0, %s38
      %s55 = sphi 0, %s39
      %s59 = sphi 0, %s59
      %s61 = sphi 0, %s59
      %s62 = sphi 0, %s61
      %s76 = sphi 0, %s62
      %s80 = sphi 0, %s80
      %s82 = sphi 0, %s80
      %s83 = sphi 0, %s82
      %s97 = sphi 0, %s83
      %s101 = sphi 0, %s101
      %s103 = sphi 0, %s101
      %s104 = sphi 0, %s103
      %s118 = sphi 0, %s104
      %s122 = sphi 0, %s122
      %s124 = sphi 0, %s122
      %s125 = sphi 0, %s124
      %s139 = sphi 0, %s125
      %s143 = sphi 0, %s143
      %s145 = sphi 0, %s143
      %s146 = sphi 0, %s145
      %s160 = sphi 0, %s146
      %s164 = sphi 0, %s164
      %s166 = sphi 0, %s164
      %s167 = sphi 0, %s166
      %s181 = sphi 0, %s167
      %s185 = sphi 0, %s185
      %s187 = sphi 0, %s185
      %s188 = sphi 0, %s187
      %s202 = sphi 0, %s188
      %s206 = sphi 0, %s206
      %s208 = sphi 0, %s206
      %s209 = sphi 0, %s208
      %s223 = sphi 0, %s209
      %s227 = sphi 0, %s227
      %s229 = sphi 0, %s227
      %s230 = sphi 0, %s229
      %s244 = sphi 0, %s230
      %s248 = sphi 0, %s248
      %s250 = sphi 0, %s248
      %s251 = sphi 0, %s250
      %s265 = sphi 0, %s251
      %s271 = sphi 0, %s273
      %s274 = sphi 0, %s271
      %s275 = sphi 0, %s274
      %s291 = sphi 0, %s275
    $region4: #{tpu_custom_call.1} parent=1 // loop_header_branch
      %28 = sbr.rel (%p26) target = $region8
    $region5: #{tpu_custom_call.1} parent=1 // loop_body
      %s30 = ssub.s32 %s25, 1
      %s31 = ssub.s32 %s25, 2
      %s32 = sadd.s32 %s25, 1
      %s33 = ssub.s32 %s25, %s32
      %p34 = scmp.eq.s32.totalorder %s33, 0
      %s36 = sadd.s32 %s35, 1
      %s37 = scalar_select %p34, %s35, %s36
      %p40 = pneg %p34
      %p41 = scmp.eq.s32.totalorder %s25, 1
      %p42 = por %p40, %p41
      %p43 = scmp.ne.s32.totalorder %s35, %s38
      %p44 = scmp.eq.s32.totalorder %s25, 0
      %p45 = por %p43, %p44
      %p46 = scmp.ne.s32.totalorder %s35, %s38
      %p47 = scmp.eq.s32.totalorder %s30, 1
      %p48 = por %p46, %p47
      %p49 = scmp.ne.s32.totalorder %s38, %s39
      %p50 = scmp.eq.s32.totalorder %s30, 0
      %p51 = por %p49, %p50
      %p52 = scmp.ne.s32.totalorder %s38, %s39
      %p53 = scmp.eq.s32.totalorder %s31, 1
      %p54 = por %p52, %p53
      %p56 = scmp.ne.s32.totalorder %s39, %s55
      %p57 = scmp.eq.s32.totalorder %s31, 0
      %p58 = por %p56, %p57
      %s60 = sadd.s32 %s59, 1
      %p63 = scmp.eq.s32.totalorder %s25, 1
      %p64 = scmp.ne.s32.totalorder %s59, %s61
      %p65 = scmp.eq.s32.totalorder %s25, 0
      %p66 = por %p64, %p65
      %p67 = scmp.ne.s32.totalorder %s59, %s61
      %p68 = scmp.eq.s32.totalorder %s30, 1
      %p69 = por %p67, %p68
      %p70 = scmp.ne.s32.totalorder %s61, %s62
      %p71 = scmp.eq.s32.totalorder %s30, 0
      %p72 = por %p70, %p71
      %p73 = scmp.ne.s32.totalorder %s61, %s62
      %p74 = scmp.eq.s32.totalorder %s31, 1
      %p75 = por %p73, %p74
      %p77 = scmp.ne.s32.totalorder %s62, %s76
      %p78 = scmp.eq.s32.totalorder %s31, 0
      %p79 = por %p77, %p78
      %s81 = sadd.s32 %s80, 1
      %p84 = scmp.eq.s32.totalorder %s25, 1
      %p85 = scmp.ne.s32.totalorder %s80, %s82
      %p86 = scmp.eq.s32.totalorder %s25, 0
      %p87 = por %p85, %p86
      %p88 = scmp.ne.s32.totalorder %s80, %s82
      %p89 = scmp.eq.s32.totalorder %s30, 1
      %p90 = por %p88, %p89
      %p91 = scmp.ne.s32.totalorder %s82, %s83
      %p92 = scmp.eq.s32.totalorder %s30, 0
      %p93 = por %p91, %p92
      %p94 = scmp.ne.s32.totalorder %s82, %s83
      %p95 = scmp.eq.s32.totalorder %s31, 1
      %p96 = por %p94, %p95
      %p98 = scmp.ne.s32.totalorder %s83, %s97
      %p99 = scmp.eq.s32.totalorder %s31, 0
      %p100 = por %p98, %p99
      %s102 = sadd.s32 %s101, 1
      %p105 = scmp.eq.s32.totalorder %s25, 1
      %p106 = scmp.ne.s32.totalorder %s101, %s103
      %p107 = scmp.eq.s32.totalorder %s25, 0
      %p108 = por %p106, %p107
      %p109 = scmp.ne.s32.totalorder %s101, %s103
      %p110 = scmp.eq.s32.totalorder %s30, 1
      %p111 = por %p109, %p110
      %p112 = scmp.ne.s32.totalorder %s103, %s104
      %p113 = scmp.eq.s32.totalorder %s30, 0
      %p114 = por %p112, %p113
      %p115 = scmp.ne.s32.totalorder %s103, %s104
      %p116 = scmp.eq.s32.totalorder %s31, 1
      %p117 = por %p115, %p116
      %p119 = scmp.ne.s32.totalorder %s104, %s118
      %p120 = scmp.eq.s32.totalorder %s31, 0
      %p121 = por %p119, %p120
      %s123 = sadd.s32 %s122, 1
      %p126 = scmp.eq.s32.totalorder %s25, 1
      %p127 = scmp.ne.s32.totalorder %s122, %s124
      %p128 = scmp.eq.s32.totalorder %s25, 0
      %p129 = por %p127, %p128
      %p130 = scmp.ne.s32.totalorder %s122, %s124
      %p131 = scmp.eq.s32.totalorder %s30, 1
      %p132 = por %p130, %p131
      %p133 = scmp.ne.s32.totalorder %s124, %s125
      %p134 = scmp.eq.s32.totalorder %s30, 0
      %p135 = por %p133, %p134
      %p136 = scmp.ne.s32.totalorder %s124, %s125
      %p137 = scmp.eq.s32.totalorder %s31, 1
      %p138 = por %p136, %p137
      %p140 = scmp.ne.s32.totalorder %s125, %s139
      %p141 = scmp.eq.s32.totalorder %s31, 0
      %p142 = por %p140, %p141
      %s144 = sadd.s32 %s143, 1
      %p147 = scmp.eq.s32.totalorder %s25, 1
      %p148 = scmp.ne.s32.totalorder %s143, %s145
      %p149 = scmp.eq.s32.totalorder %s25, 0
      %p150 = por %p148, %p149
      %p151 = scmp.ne.s32.totalorder %s143, %s145
      %p152 = scmp.eq.s32.totalorder %s30, 1
      %p153 = por %p151, %p152
      %p154 = scmp.ne.s32.totalorder %s145, %s146
      %p155 = scmp.eq.s32.totalorder %s30, 0
      %p156 = por %p154, %p155
      %p157 = scmp.ne.s32.totalorder %s145, %s146
      %p158 = scmp.eq.s32.totalorder %s31, 1
      %p159 = por %p157, %p158
      %p161 = scmp.ne.s32.totalorder %s146, %s160
      %p162 = scmp.eq.s32.totalorder %s31, 0
      %p163 = por %p161, %p162
      %s165 = sadd.s32 %s164, 1
      %p168 = scmp.eq.s32.totalorder %s25, 1
      %p169 = scmp.ne.s32.totalorder %s164, %s166
      %p170 = scmp.eq.s32.totalorder %s25, 0
      %p171 = por %p169, %p170
      %p172 = scmp.ne.s32.totalorder %s164, %s166
      %p173 = scmp.eq.s32.totalorder %s30, 1
      %p174 = por %p172, %p173
      %p175 = scmp.ne.s32.totalorder %s166, %s167
      %p176 = scmp.eq.s32.totalorder %s30, 0
      %p177 = por %p175, %p176
      %p178 = scmp.ne.s32.totalorder %s166, %s167
      %p179 = scmp.eq.s32.totalorder %s31, 1
      %p180 = por %p178, %p179
      %p182 = scmp.ne.s32.totalorder %s167, %s181
      %p183 = scmp.eq.s32.totalorder %s31, 0
      %p184 = por %p182, %p183
      %s186 = sadd.s32 %s185, 1
      %p189 = scmp.eq.s32.totalorder %s25, 1
      %p190 = scmp.ne.s32.totalorder %s185, %s187
      %p191 = scmp.eq.s32.totalorder %s25, 0
      %p192 = por %p190, %p191
      %p193 = scmp.ne.s32.totalorder %s185, %s187
      %p194 = scmp.eq.s32.totalorder %s30, 1
      %p195 = por %p193, %p194
      %p196 = scmp.ne.s32.totalorder %s187, %s188
      %p197 = scmp.eq.s32.totalorder %s30, 0
      %p198 = por %p196, %p197
      %p199 = scmp.ne.s32.totalorder %s187, %s188
      %p200 = scmp.eq.s32.totalorder %s31, 1
      %p201 = por %p199, %p200
      %p203 = scmp.ne.s32.totalorder %s188, %s202
      %p204 = scmp.eq.s32.totalorder %s31, 0
      %p205 = por %p203, %p204
      %s207 = sadd.s32 %s206, 1
      %p210 = scmp.eq.s32.totalorder %s25, 1
      %p211 = scmp.ne.s32.totalorder %s206, %s208
      %p212 = scmp.eq.s32.totalorder %s25, 0
      %p213 = por %p211, %p212
      %p214 = scmp.ne.s32.totalorder %s206, %s208
      %p215 = scmp.eq.s32.totalorder %s30, 1
      %p216 = por %p214, %p215
      %p217 = scmp.ne.s32.totalorder %s208, %s209
      %p218 = scmp.eq.s32.totalorder %s30, 0
      %p219 = por %p217, %p218
      %p220 = scmp.ne.s32.totalorder %s208, %s209
      %p221 = scmp.eq.s32.totalorder %s31, 1
      %p222 = por %p220, %p221
      %p224 = scmp.ne.s32.totalorder %s209, %s223
      %p225 = scmp.eq.s32.totalorder %s31, 0
      %p226 = por %p224, %p225
      %s228 = sadd.s32 %s227, 1
      %p231 = scmp.eq.s32.totalorder %s25, 1
      %p232 = scmp.ne.s32.totalorder %s227, %s229
      %p233 = scmp.eq.s32.totalorder %s25, 0
      %p234 = por %p232, %p233
      %p235 = scmp.ne.s32.totalorder %s227, %s229
      %p236 = scmp.eq.s32.totalorder %s30, 1
      %p237 = por %p235, %p236
      %p238 = scmp.ne.s32.totalorder %s229, %s230
      %p239 = scmp.eq.s32.totalorder %s30, 0
      %p240 = por %p238, %p239
      %p241 = scmp.ne.s32.totalorder %s229, %s230
      %p242 = scmp.eq.s32.totalorder %s31, 1
      %p243 = por %p241, %p242
      %p245 = scmp.ne.s32.totalorder %s230, %s244
      %p246 = scmp.eq.s32.totalorder %s31, 0
      %p247 = por %p245, %p246
      %s249 = sadd.s32 %s248, 1
      %p252 = scmp.eq.s32.totalorder %s25, 1
      %p253 = scmp.ne.s32.totalorder %s248, %s250
      %p254 = scmp.eq.s32.totalorder %s25, 0
      %p255 = por %p253, %p254
      %p256 = scmp.ne.s32.totalorder %s248, %s250
      %p257 = scmp.eq.s32.totalorder %s30, 1
      %p258 = por %p256, %p257
      %p259 = scmp.ne.s32.totalorder %s250, %s251
      %p260 = scmp.eq.s32.totalorder %s30, 0
      %p261 = por %p259, %p260
      %p262 = scmp.ne.s32.totalorder %s250, %s251
      %p263 = scmp.eq.s32.totalorder %s31, 1
      %p264 = por %p262, %p263
      %p266 = scmp.ne.s32.totalorder %s251, %s265
      %p267 = scmp.eq.s32.totalorder %s31, 0
      %p268 = por %p266, %p267
      %s269 = ssub.s32 %s25, %s32
      %p270 = scmp.eq.s32.totalorder %s269, 0
      %s272 = sadd.s32 %s271, 1
      %s273 = scalar_select %p270, %s271, %s272
      %p276 = pneg %p270
      %p277 = scmp.eq.s32.totalorder %s25, 1
      %p278 = por %p276, %p277
      %p279 = scmp.ne.s32.totalorder %s271, %s274
      %p280 = scmp.eq.s32.totalorder %s25, 0
      %p281 = por %p279, %p280
      %p282 = scmp.ne.s32.totalorder %s271, %s274
      %p283 = scmp.eq.s32.totalorder %s30, 1
      %p284 = por %p282, %p283
      %p285 = scmp.ne.s32.totalorder %s274, %s275
      %p286 = scmp.eq.s32.totalorder %s30, 0
      %p287 = por %p285, %p286
      %p288 = scmp.ne.s32.totalorder %s274, %s275
      %p289 = scmp.eq.s32.totalorder %s31, 1
      %p290 = por %p288, %p289
      %p292 = scmp.ne.s32.totalorder %s275, %s291
      %p293 = scmp.eq.s32.totalorder %s31, 0
      %p294 = por %p292, %p293
      %p295 = scmp.le.s32.totalorder 1, %s25
      %p296 = scmp.lt.s32.totalorder %s25, 3
      %p297 = pnand %p295, %p296
      %p298 = pneg %p297
      // Predicated region
      $region9: #{tpu_custom_call.1} parent=5 // pred_check
        _
      $region10: #{tpu_custom_call.1} parent=5 // pred_check_branch
        %300 = sbr.rel (%p297) target = $region12
      $region11: #{tpu_custom_call.1} parent=5 // pred_region
        %s301 = ssub.s32 %s25, 1
        // Predicated region
        $region13: #{tpu_custom_call.1} parent=11 // pred_check
          %p302 = pneg %p72
        $region14: #{tpu_custom_call.1} parent=11 // pred_check_branch
          %304 = sbr.rel (%p302) target = $region16
        $region15: #{tpu_custom_call.1} parent=11 // pred_region
          %s306 = ssub.s32 1024, 1024
          %307 = vsyncadd [#allocation6], %s306
          %s308 = sshll.u32 [#allocation5], 4
          %s309 = int_to_ptr.vmem [resolvable:$true] %s308
          %314 = dma.hbm_to_vmem [thread:$0]  %s1, 1024, %s309, [#allocation6], 64, 64, 4
        $region16: #{tpu_custom_call.1} parent=11 // pred_fallthru
          _
        // Predicated region
        $region17: #{tpu_custom_call.1} parent=11 // pred_check
          %p315 = pneg %p93
        $region18: #{tpu_custom_call.1} parent=11 // pred_check_branch
          %317 = sbr.rel (%p315) target = $region20
        $region19: #{tpu_custom_call.1} parent=11 // pred_region
          _
        $region20: #{tpu_custom_call.1} parent=11 // pred_fallthru
          _
        // Predicated region
        $region21: #{tpu_custom_call.1} parent=11 // pred_check
          %p318 = pneg %p114
        $region22: #{tpu_custom_call.1} parent=11 // pred_check_branch
          %320 = sbr.rel (%p318) target = $region24
        $region23: #{tpu_custom_call.1} parent=11 // pred_region
          %s322 = ssub.s32 4096, 4096
          %323 = vsyncadd [#allocation6], %s322
          %s324 = sshll.u32 [#allocation7], 4
          %s325 = int_to_ptr.vmem [resolvable:$true] %s324
          %330 = dma.hbm_to_vmem [thread:$0]  %s3, 4096, %s325, [#allocation6], 64, 64, 4
        $region24: #{tpu_custom_call.1} parent=11 // pred_fallthru
          _
        // Predicated region
        $region25: #{tpu_custom_call.1} parent=11 // pred_check
          %p331 = pneg %p135
        $region26: #{tpu_custom_call.1} parent=11 // pred_check_branch
          %333 = sbr.rel (%p331) target = $region28
        $region27: #{tpu_custom_call.1} parent=11 // pred_region
          _
        $region28: #{tpu_custom_call.1} parent=11 // pred_fallthru
          _
        // Predicated region
        $region29: #{tpu_custom_call.1} parent=11 // pred_check
          %p334 = pneg %p156
        $region30: #{tpu_custom_call.1} parent=11 // pred_check_branch
          %336 = sbr.rel (%p334) target = $region32
        $region31: #{tpu_custom_call.1} parent=11 // pred_region
          _
        $region32: #{tpu_custom_call.1} parent=11 // pred_fallthru
          _
        // Predicated region
        $region33: #{tpu_custom_call.1} parent=11 // pred_check
          %p337 = pneg %p177
        $region34: #{tpu_custom_call.1} parent=11 // pred_check_branch
          %339 = sbr.rel (%p337) target = $region36
        $region35: #{tpu_custom_call.1} parent=11 // pred_region
          _
        $region36: #{tpu_custom_call.1} parent=11 // pred_fallthru
          _
        // Predicated region
        $region37: #{tpu_custom_call.1} parent=11 // pred_check
          %p340 = pneg %p198
        $region38: #{tpu_custom_call.1} parent=11 // pred_check_branch
          %342 = sbr.rel (%p340) target = $region40
        $region39: #{tpu_custom_call.1} parent=11 // pred_region
          _
        $region40: #{tpu_custom_call.1} parent=11 // pred_fallthru
          _
        // Predicated region
        $region41: #{tpu_custom_call.1} parent=11 // pred_check
          %p343 = pneg %p219
        $region42: #{tpu_custom_call.1} parent=11 // pred_check_branch
          %345 = sbr.rel (%p343) target = $region44
        $region43: #{tpu_custom_call.1} parent=11 // pred_region
          _
        $region44: #{tpu_custom_call.1} parent=11 // pred_fallthru
          _
        // Predicated region
        $region45: #{tpu_custom_call.1} parent=11 // pred_check
          %p346 = pneg %p240
        $region46: #{tpu_custom_call.1} parent=11 // pred_check_branch
          %348 = sbr.rel (%p346) target = $region48
        $region47: #{tpu_custom_call.1} parent=11 // pred_region
          %s350 = ssub.s32 1024, 1024
          %351 = vsyncadd [#allocation9], %s350
          %s352 = sshll.u32 [#allocation8], 4
          %s353 = int_to_ptr.vmem [resolvable:$true] %s352
          %358 = dma.hbm_to_vmem [thread:$0]  %s9, 1024, %s353, [#allocation9], 64, 64, 4
        $region48: #{tpu_custom_call.1} parent=11 // pred_fallthru
          _
        // Predicated region
        $region49: #{tpu_custom_call.1} parent=11 // pred_check
          %p359 = pneg %p261
        $region50: #{tpu_custom_call.1} parent=11 // pred_check_branch
          %361 = sbr.rel (%p359) target = $region52
        $region51: #{tpu_custom_call.1} parent=11 // pred_region
          _
        $region52: #{tpu_custom_call.1} parent=11 // pred_fallthru
          _
      $region12: #{tpu_custom_call.1} parent=5 // pred_fallthru
        _
      %p362 = scmp.lt.s32.totalorder %s25, 2
      // Predicated region
      $region53: #{tpu_custom_call.1} parent=5 // pred_check
        %p363 = pneg %p362
      $region54: #{tpu_custom_call.1} parent=5 // pred_check_branch
        %365 = sbr.rel (%p363) target = $region56
      $region55: #{tpu_custom_call.1} parent=5 // pred_region
        // Predicated region
        $region57: #{tpu_custom_call.1} parent=55 // pred_check
          %p366 = pneg %p45
        $region58: #{tpu_custom_call.1} parent=55 // pred_check_branch
          %368 = sbr.rel (%p366) target = $region60
        $region59: #{tpu_custom_call.1} parent=55 // pred_region
          %s369 = sand.u32 %s35, 1
          %s370 = scalar_lea.sflag [#allocation3], %s369
          %s371 = sand.u32 %s35, 1
          %s372 = smul.addr %s371, 4
          %s373 = scalar_lea.vmem [#allocation2], %s372
          %s375 = ssub.s32 64, 64
          %376 = vsyncadd %s370, %s375
          %s377 = smul.addr %s25, 64
          %s378 = scalar_lea.hbm %s0, %s377
          %s380 = sshll.u32 %s373, 4
          %s381 = int_to_ptr.vmem [resolvable:$true] %s380
          %383 = dma.hbm_to_vmem [thread:$0]  %s378, 64, %s381, %s370
        $region60: #{tpu_custom_call.1} parent=55 // pred_fallthru
          _
      $region56: #{tpu_custom_call.1} parent=5 // pred_fallthru
        _
      %p384 = scmp.le.s32.totalorder 1, %s25
      %p385 = scmp.lt.s32.totalorder %s25, 3
      %p386 = pnand %p384, %p385
      %p387 = pneg %p386
      // Predicated region
      $region61: #{tpu_custom_call.1} parent=5 // pred_check
        _
      $region62: #{tpu_custom_call.1} parent=5 // pred_check_branch
        %389 = sbr.rel (%p386) target = $region64
      $region63: #{tpu_custom_call.1} parent=5 // pred_region
        %s390 = ssub.s32 %s25, 1
        %s391 = sand.u32 %s38, 1
        %s392 = scalar_lea.sflag [#allocation3], %s391
        %s393 = sand.u32 %s38, 1
        %s394 = smul.addr %s393, 4
        %s395 = scalar_lea.vmem [#allocation2], %s394
        // Predicated region
        $region65: #{tpu_custom_call.1} parent=63 // pred_check
          %p396 = pneg %p51
        $region66: #{tpu_custom_call.1} parent=63 // pred_check_branch
          %398 = sbr.rel (%p396) target = $region68
        $region67: #{tpu_custom_call.1} parent=63 // pred_region
          %399 = dma.done %s392, 64
        $region68: #{tpu_custom_call.1} parent=63 // pred_fallthru
          _
        // Predicated region
        $region69: #{tpu_custom_call.1} parent=63 // pred_check
          %p400 = pneg %p72
        $region70: #{tpu_custom_call.1} parent=63 // pred_check_branch
          %402 = sbr.rel (%p400) target = $region72
        $region71: #{tpu_custom_call.1} parent=63 // pred_region
          %403 = dma.done [#allocation6], 1024
        $region72: #{tpu_custom_call.1} parent=63 // pred_fallthru
          _
        // Predicated region
        $region73: #{tpu_custom_call.1} parent=63 // pred_check
          %p404 = pneg %p114
        $region74: #{tpu_custom_call.1} parent=63 // pred_check_branch
          %406 = sbr.rel (%p404) target = $region76
        $region75: #{tpu_custom_call.1} parent=63 // pred_region
          %407 = dma.done [#allocation6], 4096
        $region76: #{tpu_custom_call.1} parent=63 // pred_fallthru
          _
        // Predicated region
        $region77: #{tpu_custom_call.1} parent=63 // pred_check
          %p408 = pneg %p240
        $region78: #{tpu_custom_call.1} parent=63 // pred_check_branch
          %410 = sbr.rel (%p408) target = $region80
        $region79: #{tpu_custom_call.1} parent=63 // pred_region
          %411 = dma.done [#allocation9], 1024
        $region80: #{tpu_custom_call.1} parent=63 // pred_fallthru
          _
        %s412 = sand.u32 %s38, 1
        %s413 = scalar_lea.sflag [#allocation3], %s412
        %s414 = sand.u32 %s38, 1
        %s415 = smul.addr %s414, 4
        %s416 = scalar_lea.vmem [#allocation2], %s415
        %p417 = pneg %p51
        %p418 = pneg %p48
        %p419 = pneg %p72
        %p420 = pneg %p69
        %p421 = pneg %p93
        %p422 = pneg %p90
        %p423 = pneg %p114
        %p424 = pneg %p111
        %p425 = pneg %p135
        %p426 = pneg %p132
        %p427 = pneg %p156
        %p428 = pneg %p153
        %p429 = pneg %p177
        %p430 = pneg %p174
        %p431 = pneg %p198
        %p432 = pneg %p195
        %p433 = pneg %p219
        %p434 = pneg %p216
        %p435 = pneg %p240
        %p436 = pneg %p237
        %p437 = pneg %p261
        %p438 = pneg %p258
        %p439 = pneg %p287
        %p440 = pneg %p284
        %s441 = sand.u32 %s274, 1
        %s442 = scalar_lea.sflag [#allocation4], %s441
        %s443 = sand.u32 %s274, 1
        %s444 = smul.addr %s443, 8
        %s445 = scalar_lea.vmem [#allocation10], %s444
        %v447 = vld [vmem:[%s395] sm:$0xf]
        %v448 = vld [vmem:[#allocation5] sm:$0xf]
        %v449 = vld [vmem:[#allocation5 + $0x4] sm:$0xf]
        %v450 = vld [vmem:[#allocation5 + $0x8] sm:$0xf]
        %v451 = vld [vmem:[#allocation5 + $0xc] sm:$0xf]
        %v452 = vld [vmem:[#allocation5 + $0x10] sm:$0xf]
        %v453 = vld [vmem:[#allocation5 + $0x14] sm:$0xf]
        %v454 = vld [vmem:[#allocation5 + $0x18] sm:$0xf]
        %v455 = vld [vmem:[#allocation5 + $0x1c] sm:$0xf]
        %v456 = vld [vmem:[#allocation5 + $0x20] sm:$0xf]
        %v457 = vld [vmem:[#allocation5 + $0x24] sm:$0xf]
        %v458 = vld [vmem:[#allocation5 + $0x28] sm:$0xf]
        %v459 = vld [vmem:[#allocation5 + $0x2c] sm:$0xf]
        %v460 = vld [vmem:[#allocation5 + $0x30] sm:$0xf]
        %v461 = vld [vmem:[#allocation5 + $0x34] sm:$0xf]
        %v462 = vld [vmem:[#allocation5 + $0x38] sm:$0xf]
        %v463 = vld [vmem:[#allocation5 + $0x3c] sm:$0xf]
        %v464 = vld [vmem:[%s2] sm:$0x1]
        %v466 = vlaneseq
        %v467 = vshrl.u32 %v466, 7
        %v468 = vsub.s32 0, %v467
        %v469 = vrot.slane %v464, %v468
        %v487 = vunpack.c.l.b16 %v448
        %v488 = vunpack.c.l.b16 %v449
        %v489 = vunpack.c.l.b16 %v450
        %v490 = vunpack.c.l.b16 %v451
        %v491 = vunpack.c.l.b16 %v452
        %v492 = vunpack.c.l.b16 %v453
        %v493 = vunpack.c.l.b16 %v454
        %v494 = vunpack.c.l.b16 %v455
        %v495 = vunpack.c.l.b16 %v456
        %v496 = vunpack.c.l.b16 %v457
        %v497 = vunpack.c.l.b16 %v458
        %v498 = vunpack.c.l.b16 %v459
        %v499 = vunpack.c.l.b16 %v460
        %v500 = vunpack.c.l.b16 %v461
        %v501 = vunpack.c.l.b16 %v462
        %v502 = vunpack.c.l.b16 %v463
        %v503 = vpack.c.b16 %v488, %v487
        %v504 = vpack.c.b16 %v490, %v489
        %v505 = vpack.c.b16 %v492, %v491
        %v506 = vpack.c.b16 %v494, %v493
        %v507 = vpack.c.b16 %v496, %v495
        %v508 = vpack.c.b16 %v498, %v497
        %v509 = vpack.c.b16 %v500, %v499
        %v510 = vpack.c.b16 %v502, %v501
        %519 = vmatprep.subr.bf16.mxu0 0
        %520 = vmatpush1.bf16.msra.mxu0 %v503
        %521 = vmatprep.subr.bf16.mxu0 0
        %522 = vmatpush1.bf16.msra.mxu0 %v504
        %523 = vmatprep.subr.bf16.mxu0 0
        %524 = vmatpush1.bf16.msra.mxu0 %v505
        %525 = vmatprep.subr.bf16.mxu0 0
        %526 = vmatpush1.bf16.msra.mxu0 %v506
        %527 = vmatprep.subr.bf16.mxu0 0
        %528 = vmatpush1.bf16.msra.mxu0 %v507
        %529 = vmatprep.subr.bf16.mxu0 0
        %530 = vmatpush1.bf16.msra.mxu0 %v508
        %531 = vmatprep.subr.bf16.mxu0 0
        %532 = vmatpush1.bf16.msra.mxu0 %v509
        %533 = vmatprep.subr.bf16.mxu0 0
        %534 = vmatpush1.bf16.msra.mxu0 %v510
        %535 = vmatprep.subr.bf16.mxu0 0
        %536 = vmatpush1.bf16.msra.mxu0 0
        %537 = vmatprep.subr.bf16.mxu0 0
        %538 = vmatpush1.bf16.msra.mxu0 0
        %539 = vmatprep.subr.bf16.mxu0 0
        %540 = vmatpush1.bf16.msra.mxu0 0
        %541 = vmatprep.subr.bf16.mxu0 0
        %542 = vmatpush1.bf16.msra.mxu0 0
        %543 = vmatprep.subr.bf16.mxu0 0
        %544 = vmatpush1.bf16.msra.mxu0 0
        %545 = vmatprep.subr.bf16.mxu0 0
        %546 = vmatpush1.bf16.msra.mxu0 0
        %547 = vmatprep.subr.bf16.mxu0 0
        %548 = vmatpush1.bf16.msra.mxu0 0
        %549 = vmatprep.subr.bf16.mxu0 0
        %550 = vmatpush1.bf16.msra.mxu0 0
        %551 = vmatprep.mubr.bf16.mxu0 0
        %552 = vmatmul.mubr.bf16.gmra.mrb[0].mxu0 %v447
        %v553 = vpop.f32.mrb[0].mxu0
        %v554 = vadd.f32 %v469, %v553
        %v555 = vpop.f32.mrb[0].mxu0
        %v556 = vpop.f32.mrb[0].mxu0
        %v557 = vpop.f32.mrb[0].mxu0
        %558 = vdwg.mxu0
        %v559 = vld [vmem:[#allocation7] sm:$0xf]
        %v560 = vld [vmem:[#allocation7 + $0x4] sm:$0xf]
        %v561 = vld [vmem:[#allocation7 + $0x8] sm:$0xf]
        %v562 = vld [vmem:[#allocation7 + $0xc] sm:$0xf]
        %v563 = vld [vmem:[#allocation7 + $0x10] sm:$0xf]
        %v564 = vld [vmem:[#allocation7 + $0x14] sm:$0xf]
        %v565 = vld [vmem:[#allocation7 + $0x18] sm:$0xf]
        %v566 = vld [vmem:[#allocation7 + $0x1c] sm:$0xf]
        %v567 = vld [vmem:[#allocation7 + $0x20] sm:$0xf]
        %v568 = vld [vmem:[#allocation7 + $0x24] sm:$0xf]
        %v569 = vld [vmem:[#allocation7 + $0x28] sm:$0xf]
        %v570 = vld [vmem:[#allocation7 + $0x2c] sm:$0xf]
        %v571 = vld [vmem:[#allocation7 + $0x30] sm:$0xf]
        %v572 = vld [vmem:[#allocation7 + $0x34] sm:$0xf]
        %v573 = vld [vmem:[#allocation7 + $0x38] sm:$0xf]
        %v574 = vld [vmem:[#allocation7 + $0x3c] sm:$0xf]
        %v575 = vld [vmem:[%s4] sm:$0x1]
        %v576 = vld [vmem:[%s5] sm:$0x1]
        %v577 = vld [vmem:[%s6] sm:$0x1]
        %v578 = vpack.c.bf16 %v554, %v554
        %v579 = vlaneseq
        %v580 = vshrl.u32 %v579, 7
        %v581 = vsub.s32 0, %v580
        %v582 = vrot.slane %v575, %v581
        %v599 = vunpack.c.l.b16 %v559
        %v600 = vunpack.c.l.b16 %v560
        %v601 = vunpack.c.l.b16 %v561
        %v602 = vunpack.c.l.b16 %v562
        %v603 = vunpack.c.l.b16 %v563
        %v604 = vunpack.c.l.b16 %v564
        %v605 = vunpack.c.l.b16 %v565
        %v606 = vunpack.c.l.b16 %v566
        %v607 = vunpack.c.l.b16 %v567
        %v608 = vunpack.c.l.b16 %v568
        %v609 = vunpack.c.l.b16 %v569
        %v610 = vunpack.c.l.b16 %v570
        %v611 = vunpack.c.l.b16 %v571
        %v612 = vunpack.c.l.b16 %v572
        %v613 = vunpack.c.l.b16 %v573
        %v614 = vunpack.c.l.b16 %v574
        %v615 = vpack.c.b16 %v600, %v599
        %v616 = vpack.c.b16 %v602, %v601
        %v617 = vpack.c.b16 %v604, %v603
        %v618 = vpack.c.b16 %v606, %v605
        %v619 = vpack.c.b16 %v608, %v607
        %v620 = vpack.c.b16 %v610, %v609
        %v621 = vpack.c.b16 %v612, %v611
        %v622 = vpack.c.b16 %v614, %v613
        %631 = vmatprep.subr.bf16.mxu0 0
        %632 = vmatpush1.bf16.msra.mxu0 %v615
        %633 = vmatprep.subr.bf16.mxu0 0
        %634 = vmatpush1.bf16.msra.mxu0 %v616
        %635 = vmatprep.subr.bf16.mxu0 0
        %636 = vmatpush1.bf16.msra.mxu0 %v617
        %637 = vmatprep.subr.bf16.mxu0 0
        %638 = vmatpush1.bf16.msra.mxu0 %v618
        %639 = vmatprep.subr.bf16.mxu0 0
        %640 = vmatpush1.bf16.msra.mxu0 %v619
        %641 = vmatprep.subr.bf16.mxu0 0
        %642 = vmatpush1.bf16.msra.mxu0 %v620
        %643 = vmatprep.subr.bf16.mxu0 0
        %644 = vmatpush1.bf16.msra.mxu0 %v621
        %645 = vmatprep.subr.bf16.mxu0 0
        %646 = vmatpush1.bf16.msra.mxu0 %v622
        %647 = vmatprep.subr.bf16.mxu0 0
        %648 = vmatpush1.bf16.msra.mxu0 0
        %649 = vmatprep.subr.bf16.mxu0 0
        %650 = vmatpush1.bf16.msra.mxu0 0
        %651 = vmatprep.subr.bf16.mxu0 0
        %652 = vmatpush1.bf16.msra.mxu0 0
        %653 = vmatprep.subr.bf16.mxu0 0
        %654 = vmatpush1.bf16.msra.mxu0 0
        %655 = vmatprep.subr.bf16.mxu0 0
        %656 = vmatpush1.bf16.msra.mxu0 0
        %657 = vmatprep.subr.bf16.mxu0 0
        %658 = vmatpush1.bf16.msra.mxu0 0
        %659 = vmatprep.subr.bf16.mxu0 0
        %660 = vmatpush1.bf16.msra.mxu0 0
        %661 = vmatprep.subr.bf16.mxu0 0
        %662 = vmatpush1.bf16.msra.mxu0 0
        %663 = vmatprep.mubr.bf16.mxu0 0
        %664 = vmatmul.mubr.bf16.gmra.mrb[0].mxu0 %v578
        %v665 = vpop.f32.mrb[0].mxu0
        %v666 = vadd.f32 %v582, %v665
        %v667 = vpop.f32.mrb[0].mxu0
        %v668 = vpop.f32.mrb[0].mxu0
        %v669 = vpop.f32.mrb[0].mxu0
        %670 = vdwg.mxu0
        %v671 = vtanh.pop %v666
        %672 = vadd.xlane.f32.xlu0 %v671
        %v673 = vpop.xlane.xlu0 %672
        %v674 = vmul.f32 %v673, 0.03125
        %v675 = vmul.f32 %v671, %v671
        %676 = vadd.xlane.f32.xlu0 %v675
        %v677 = vpop.xlane.xlu0 %676
        %v678 = vmul.f32 %v677, 0.03125
        %v679 = vmul.f32 %v674, %v674
        %v680 = vsub.f32 %v678, %v679
        %v681 = vmax.f32 %v680, 0.0
        %v682 = vsub.f32 %v671, %v674
        %v683 = vadd.f32 %v681, 1e-05
        %v684 = vrsqrt.pop %v683
        %v685 = vmul.f32 %v682, %v684
        %v686 = vlaneseq
        %v687 = vshrl.u32 %v686, 7
        %v688 = vsub.s32 0, %v687
        %v689 = vrot.slane %v576, %v688
        %v690 = vmul.f32 %v685, %v689
        %v691 = vlaneseq
        %v692 = vshrl.u32 %v691, 7
        %v693 = vsub.s32 0, %v692
        %v694 = vrot.slane %v577, %v693
        %v695 = vadd.f32 %v690, %v694
        %s696 = scalar_lea.vmem [#allocation7], 64
        %v697 = vld [vmem:[%s696] sm:$0xf]
        %v698 = vld [vmem:[%s696 + $0x4] sm:$0xf]
        %v699 = vld [vmem:[%s696 + $0x8] sm:$0xf]
        %v700 = vld [vmem:[%s696 + $0xc] sm:$0xf]
        %v701 = vld [vmem:[%s696 + $0x10] sm:$0xf]
        %v702 = vld [vmem:[%s696 + $0x14] sm:$0xf]
        %v703 = vld [vmem:[%s696 + $0x18] sm:$0xf]
        %v704 = vld [vmem:[%s696 + $0x1c] sm:$0xf]
        %v705 = vld [vmem:[%s696 + $0x20] sm:$0xf]
        %v706 = vld [vmem:[%s696 + $0x24] sm:$0xf]
        %v707 = vld [vmem:[%s696 + $0x28] sm:$0xf]
        %v708 = vld [vmem:[%s696 + $0x2c] sm:$0xf]
        %v709 = vld [vmem:[%s696 + $0x30] sm:$0xf]
        %v710 = vld [vmem:[%s696 + $0x34] sm:$0xf]
        %v711 = vld [vmem:[%s696 + $0x38] sm:$0xf]
        %v712 = vld [vmem:[%s696 + $0x3c] sm:$0xf]
        %v713 = vld [vmem:[%s4 + $0x1] sm:$0x1]
        %v714 = vld [vmem:[%s5 + $0x1] sm:$0x1]
        %v715 = vld [vmem:[%s6 + $0x1] sm:$0x1]
        %v716 = vpack.c.bf16 %v695, %v695
        %v717 = vlaneseq
        %v718 = vshrl.u32 %v717, 7
        %v719 = vsub.s32 0, %v718
        %v720 = vrot.slane %v713, %v719
        %v737 = vunpack.c.l.b16 %v697
        %v738 = vunpack.c.l.b16 %v698
        %v739 = vunpack.c.l.b16 %v699
        %v740 = vunpack.c.l.b16 %v700
        %v741 = vunpack.c.l.b16 %v701
        %v742 = vunpack.c.l.b16 %v702
        %v743 = vunpack.c.l.b16 %v703
        %v744 = vunpack.c.l.b16 %v704
        %v745 = vunpack.c.l.b16 %v705
        %v746 = vunpack.c.l.b16 %v706
        %v747 = vunpack.c.l.b16 %v707
        %v748 = vunpack.c.l.b16 %v708
        %v749 = vunpack.c.l.b16 %v709
        %v750 = vunpack.c.l.b16 %v710
        %v751 = vunpack.c.l.b16 %v711
        %v752 = vunpack.c.l.b16 %v712
        %v753 = vpack.c.b16 %v738, %v737
        %v754 = vpack.c.b16 %v740, %v739
        %v755 = vpack.c.b16 %v742, %v741
        %v756 = vpack.c.b16 %v744, %v743
        %v757 = vpack.c.b16 %v746, %v745
        %v758 = vpack.c.b16 %v748, %v747
        %v759 = vpack.c.b16 %v750, %v749
        %v760 = vpack.c.b16 %v752, %v751
        %769 = vmatprep.subr.bf16.mxu0 0
        %770 = vmatpush1.bf16.msra.mxu0 %v753
        %771 = vmatprep.subr.bf16.mxu0 0
        %772 = vmatpush1.bf16.msra.mxu0 %v754
        %773 = vmatprep.subr.bf16.mxu0 0
        %774 = vmatpush1.bf16.msra.mxu0 %v755
        %775 = vmatprep.subr.bf16.mxu0 0
        %776 = vmatpush1.bf16.msra.mxu0 %v756
        %777 = vmatprep.subr.bf16.mxu0 0
        %778 = vmatpush1.bf16.msra.mxu0 %v757
        %779 = vmatprep.subr.bf16.mxu0 0
        %780 = vmatpush1.bf16.msra.mxu0 %v758
        %781 = vmatprep.subr.bf16.mxu0 0
        %782 = vmatpush1.bf16.msra.mxu0 %v759
        %783 = vmatprep.subr.bf16.mxu0 0
        %784 = vmatpush1.bf16.msra.mxu0 %v760
        %785 = vmatprep.subr.bf16.mxu0 0
        %786 = vmatpush1.bf16.msra.mxu0 0
        %787 = vmatprep.subr.bf16.mxu0 0
        %788 = vmatpush1.bf16.msra.mxu0 0
        %789 = vmatprep.subr.bf16.mxu0 0
        %790 = vmatpush1.bf16.msra.mxu0 0
        %791 = vmatprep.subr.bf16.mxu0 0
        %792 = vmatpush1.bf16.msra.mxu0 0
        %793 = vmatprep.subr.bf16.mxu0 0
        %794 = vmatpush1.bf16.msra.mxu0 0
        %795 = vmatprep.subr.bf16.mxu0 0
        %796 = vmatpush1.bf16.msra.mxu0 0
        %797 = vmatprep.subr.bf16.mxu0 0
        %798 = vmatpush1.bf16.msra.mxu0 0
        %799 = vmatprep.subr.bf16.mxu0 0
        %800 = vmatpush1.bf16.msra.mxu0 0
        %801 = vmatprep.mubr.bf16.mxu0 0
        %802 = vmatmul.mubr.bf16.gmra.mrb[0].mxu0 %v716
        %v803 = vpop.f32.mrb[0].mxu0
        %v804 = vadd.f32 %v720, %v803
        %v805 = vpop.f32.mrb[0].mxu0
        %v806 = vpop.f32.mrb[0].mxu0
        %v807 = vpop.f32.mrb[0].mxu0
        %808 = vdwg.mxu0
        %v809 = vtanh.pop %v804
        %810 = vadd.xlane.f32.xlu0 %v809
        %v811 = vpop.xlane.xlu0 %810
        %v812 = vmul.f32 %v811, 0.03125
        %v813 = vmul.f32 %v809, %v809
        %814 = vadd.xlane.f32.xlu0 %v813
        %v815 = vpop.xlane.xlu0 %814
        %v816 = vmul.f32 %v815, 0.03125
        %v817 = vmul.f32 %v812, %v812
        %v818 = vsub.f32 %v816, %v817
        %v819 = vmax.f32 %v818, 0.0
        %v820 = vsub.f32 %v809, %v812
        %v821 = vadd.f32 %v819, 1e-05
        %v822 = vrsqrt.pop %v821
        %v823 = vmul.f32 %v820, %v822
        %v824 = vlaneseq
        %v825 = vshrl.u32 %v824, 7
        %v826 = vsub.s32 0, %v825
        %v827 = vrot.slane %v714, %v826
        %v828 = vmul.f32 %v823, %v827
        %v829 = vlaneseq
        %v830 = vshrl.u32 %v829, 7
        %v831 = vsub.s32 0, %v830
        %v832 = vrot.slane %v715, %v831
        %v833 = vadd.f32 %v828, %v832
        %v834 = vld [vmem:[%s7] sm:$0x1]
        %v835 = vld [vmem:[%s8] sm:$0x1]
        %v836 = vadd.f32 %v554, %v833
        %v837 = vtanh.pop %v836
        %838 = vadd.xlane.f32.xlu0 %v837
        %v839 = vpop.xlane.xlu0 %838
        %v840 = vmul.f32 %v839, 0.03125
        %v841 = vmul.f32 %v837, %v837
        %842 = vadd.xlane.f32.xlu0 %v841
        %v843 = vpop.xlane.xlu0 %842
        %v844 = vmul.f32 %v843, 0.03125
        %v845 = vmul.f32 %v840, %v840
        %v846 = vsub.f32 %v844, %v845
        %v847 = vmax.f32 %v846, 0.0
        %v848 = vsub.f32 %v837, %v840
        %v849 = vadd.f32 %v847, 1e-05
        %v850 = vrsqrt.pop %v849
        %v851 = vmul.f32 %v848, %v850
        %v852 = vlaneseq
        %v853 = vshrl.u32 %v852, 7
        %v854 = vsub.s32 0, %v853
        %v855 = vrot.slane %v834, %v854
        %v856 = vmul.f32 %v851, %v855
        %v857 = vlaneseq
        %v858 = vshrl.u32 %v857, 7
        %v859 = vsub.s32 0, %v858
        %v860 = vrot.slane %v835, %v859
        %v861 = vadd.f32 %v856, %v860
        %s862 = scalar_lea.vmem [#allocation7], 128
        %v863 = vld [vmem:[%s862] sm:$0xf]
        %v864 = vld [vmem:[%s862 + $0x4] sm:$0xf]
        %v865 = vld [vmem:[%s862 + $0x8] sm:$0xf]
        %v866 = vld [vmem:[%s862 + $0xc] sm:$0xf]
        %v867 = vld [vmem:[%s862 + $0x10] sm:$0xf]
        %v868 = vld [vmem:[%s862 + $0x14] sm:$0xf]
        %v869 = vld [vmem:[%s862 + $0x18] sm:$0xf]
        %v870 = vld [vmem:[%s862 + $0x1c] sm:$0xf]
        %v871 = vld [vmem:[%s862 + $0x20] sm:$0xf]
        %v872 = vld [vmem:[%s862 + $0x24] sm:$0xf]
        %v873 = vld [vmem:[%s862 + $0x28] sm:$0xf]
        %v874 = vld [vmem:[%s862 + $0x2c] sm:$0xf]
        %v875 = vld [vmem:[%s862 + $0x30] sm:$0xf]
        %v876 = vld [vmem:[%s862 + $0x34] sm:$0xf]
        %v877 = vld [vmem:[%s862 + $0x38] sm:$0xf]
        %v878 = vld [vmem:[%s862 + $0x3c] sm:$0xf]
        %v879 = vld [vmem:[%s4 + $0x2] sm:$0x1]
        %v880 = vld [vmem:[%s5 + $0x2] sm:$0x1]
        %v881 = vld [vmem:[%s6 + $0x2] sm:$0x1]
        %v882 = vpack.c.bf16 %v861, %v861
        %v883 = vlaneseq
        %v884 = vshrl.u32 %v883, 7
        %v885 = vsub.s32 0, %v884
        %v886 = vrot.slane %v879, %v885
        %v903 = vunpack.c.l.b16 %v863
        %v904 = vunpack.c.l.b16 %v864
        %v905 = vunpack.c.l.b16 %v865
        %v906 = vunpack.c.l.b16 %v866
        %v907 = vunpack.c.l.b16 %v867
        %v908 = vunpack.c.l.b16 %v868
        %v909 = vunpack.c.l.b16 %v869
        %v910 = vunpack.c.l.b16 %v870
        %v911 = vunpack.c.l.b16 %v871
        %v912 = vunpack.c.l.b16 %v872
        %v913 = vunpack.c.l.b16 %v873
        %v914 = vunpack.c.l.b16 %v874
        %v915 = vunpack.c.l.b16 %v875
        %v916 = vunpack.c.l.b16 %v876
        %v917 = vunpack.c.l.b16 %v877
        %v918 = vunpack.c.l.b16 %v878
        %v919 = vpack.c.b16 %v904, %v903
        %v920 = vpack.c.b16 %v906, %v905
        %v921 = vpack.c.b16 %v908, %v907
        %v922 = vpack.c.b16 %v910, %v909
        %v923 = vpack.c.b16 %v912, %v911
        %v924 = vpack.c.b16 %v914, %v913
        %v925 = vpack.c.b16 %v916, %v915
        %v926 = vpack.c.b16 %v918, %v917
        %935 = vmatprep.subr.bf16.mxu0 0
        %936 = vmatpush1.bf16.msra.mxu0 %v919
        %937 = vmatprep.subr.bf16.mxu0 0
        %938 = vmatpush1.bf16.msra.mxu0 %v920
        %939 = vmatprep.subr.bf16.mxu0 0
        %940 = vmatpush1.bf16.msra.mxu0 %v921
        %941 = vmatprep.subr.bf16.mxu0 0
        %942 = vmatpush1.bf16.msra.mxu0 %v922
        %943 = vmatprep.subr.bf16.mxu0 0
        %944 = vmatpush1.bf16.msra.mxu0 %v923
        %945 = vmatprep.subr.bf16.mxu0 0
        %946 = vmatpush1.bf16.msra.mxu0 %v924
        %947 = vmatprep.subr.bf16.mxu0 0
        %948 = vmatpush1.bf16.msra.mxu0 %v925
        %949 = vmatprep.subr.bf16.mxu0 0
        %950 = vmatpush1.bf16.msra.mxu0 %v926
        %951 = vmatprep.subr.bf16.mxu0 0
        %952 = vmatpush1.bf16.msra.mxu0 0
        %953 = vmatprep.subr.bf16.mxu0 0
        %954 = vmatpush1.bf16.msra.mxu0 0
        %955 = vmatprep.subr.bf16.mxu0 0
        %956 = vmatpush1.bf16.msra.mxu0 0
        %957 = vmatprep.subr.bf16.mxu0 0
        %958 = vmatpush1.bf16.msra.mxu0 0
        %959 = vmatprep.subr.bf16.mxu0 0
        %960 = vmatpush1.bf16.msra.mxu0 0
        %961 = vmatprep.subr.bf16.mxu0 0
        %962 = vmatpush1.bf16.msra.mxu0 0
        %963 = vmatprep.subr.bf16.mxu0 0
        %964 = vmatpush1.bf16.msra.mxu0 0
        %965 = vmatprep.subr.bf16.mxu0 0
        %966 = vmatpush1.bf16.msra.mxu0 0
        %967 = vmatprep.mubr.bf16.mxu0 0
        %968 = vmatmul.mubr.bf16.gmra.mrb[0].mxu0 %v882
        %v969 = vpop.f32.mrb[0].mxu0
        %v970 = vadd.f32 %v886, %v969
        %v971 = vpop.f32.mrb[0].mxu0
        %v972 = vpop.f32.mrb[0].mxu0
        %v973 = vpop.f32.mrb[0].mxu0
        %974 = vdwg.mxu0
        %v975 = vtanh.pop %v970
        %976 = vadd.xlane.f32.xlu0 %v975
        %v977 = vpop.xlane.xlu0 %976
        %v978 = vmul.f32 %v977, 0.03125
        %v979 = vmul.f32 %v975, %v975
        %980 = vadd.xlane.f32.xlu0 %v979
        %v981 = vpop.xlane.xlu0 %980
        %v982 = vmul.f32 %v981, 0.03125
        %v983 = vmul.f32 %v978, %v978
        %v984 = vsub.f32 %v982, %v983
        %v985 = vmax.f32 %v984, 0.0
        %v986 = vsub.f32 %v975, %v978
        %v987 = vadd.f32 %v985, 1e-05
        %v988 = vrsqrt.pop %v987
        %v989 = vmul.f32 %v986, %v988
        %v990 = vlaneseq
        %v991 = vshrl.u32 %v990, 7
        %v992 = vsub.s32 0, %v991
        %v993 = vrot.slane %v880, %v992
        %v994 = vmul.f32 %v989, %v993
        %v995 = vlaneseq
        %v996 = vshrl.u32 %v995, 7
        %v997 = vsub.s32 0, %v996
        %v998 = vrot.slane %v881, %v997
        %v999 = vadd.f32 %v994, %v998
        %s1000 = scalar_lea.vmem [#allocation7], 192
        %v1001 = vld [vmem:[%s1000] sm:$0xf]
        %v1002 = vld [vmem:[%s1000 + $0x4] sm:$0xf]
        %v1003 = vld [vmem:[%s1000 + $0x8] sm:$0xf]
        %v1004 = vld [vmem:[%s1000 + $0xc] sm:$0xf]
        %v1005 = vld [vmem:[%s1000 + $0x10] sm:$0xf]
        %v1006 = vld [vmem:[%s1000 + $0x14] sm:$0xf]
        %v1007 = vld [vmem:[%s1000 + $0x18] sm:$0xf]
        %v1008 = vld [vmem:[%s1000 + $0x1c] sm:$0xf]
        %v1009 = vld [vmem:[%s1000 + $0x20] sm:$0xf]
        %v1010 = vld [vmem:[%s1000 + $0x24] sm:$0xf]
        %v1011 = vld [vmem:[%s1000 + $0x28] sm:$0xf]
        %v1012 = vld [vmem:[%s1000 + $0x2c] sm:$0xf]
        %v1013 = vld [vmem:[%s1000 + $0x30] sm:$0xf]
        %v1014 = vld [vmem:[%s1000 + $0x34] sm:$0xf]
        %v1015 = vld [vmem:[%s1000 + $0x38] sm:$0xf]
        %v1016 = vld [vmem:[%s1000 + $0x3c] sm:$0xf]
        %v1017 = vld [vmem:[%s4 + $0x3] sm:$0x1]
        %v1018 = vld [vmem:[%s5 + $0x3] sm:$0x1]
        %v1019 = vld [vmem:[%s6 + $0x3] sm:$0x1]
        %v1020 = vpack.c.bf16 %v999, %v999
        %v1021 = vlaneseq
        %v1022 = vshrl.u32 %v1021, 7
        %v1023 = vsub.s32 0, %v1022
        %v1024 = vrot.slane %v1017, %v1023
        %v1041 = vunpack.c.l.b16 %v1001
        %v1042 = vunpack.c.l.b16 %v1002
        %v1043 = vunpack.c.l.b16 %v1003
        %v1044 = vunpack.c.l.b16 %v1004
        %v1045 = vunpack.c.l.b16 %v1005
        %v1046 = vunpack.c.l.b16 %v1006
        %v1047 = vunpack.c.l.b16 %v1007
        %v1048 = vunpack.c.l.b16 %v1008
        %v1049 = vunpack.c.l.b16 %v1009
        %v1050 = vunpack.c.l.b16 %v1010
        %v1051 = vunpack.c.l.b16 %v1011
        %v1052 = vunpack.c.l.b16 %v1012
        %v1053 = vunpack.c.l.b16 %v1013
        %v1054 = vunpack.c.l.b16 %v1014
        %v1055 = vunpack.c.l.b16 %v1015
        %v1056 = vunpack.c.l.b16 %v1016
        %v1057 = vpack.c.b16 %v1042, %v1041
        %v1058 = vpack.c.b16 %v1044, %v1043
        %v1059 = vpack.c.b16 %v1046, %v1045
        %v1060 = vpack.c.b16 %v1048, %v1047
        %v1061 = vpack.c.b16 %v1050, %v1049
        %v1062 = vpack.c.b16 %v1052, %v1051
        %v1063 = vpack.c.b16 %v1054, %v1053
        %v1064 = vpack.c.b16 %v1056, %v1055
        %1073 = vmatprep.subr.bf16.mxu0 0
        %1074 = vmatpush1.bf16.msra.mxu0 %v1057
        %1075 = vmatprep.subr.bf16.mxu0 0
        %1076 = vmatpush1.bf16.msra.mxu0 %v1058
        %1077 = vmatprep.subr.bf16.mxu0 0
        %1078 = vmatpush1.bf16.msra.mxu0 %v1059
        %1079 = vmatprep.subr.bf16.mxu0 0
        %1080 = vmatpush1.bf16.msra.mxu0 %v1060
        %1081 = vmatprep.subr.bf16.mxu0 0
        %1082 = vmatpush1.bf16.msra.mxu0 %v1061
        %1083 = vmatprep.subr.bf16.mxu0 0
        %1084 = vmatpush1.bf16.msra.mxu0 %v1062
        %1085 = vmatprep.subr.bf16.mxu0 0
        %1086 = vmatpush1.bf16.msra.mxu0 %v1063
        %1087 = vmatprep.subr.bf16.mxu0 0
        %1088 = vmatpush1.bf16.msra.mxu0 %v1064
        %1089 = vmatprep.subr.bf16.mxu0 0
        %1090 = vmatpush1.bf16.msra.mxu0 0
        %1091 = vmatprep.subr.bf16.mxu0 0
        %1092 = vmatpush1.bf16.msra.mxu0 0
        %1093 = vmatprep.subr.bf16.mxu0 0
        %1094 = vmatpush1.bf16.msra.mxu0 0
        %1095 = vmatprep.subr.bf16.mxu0 0
        %1096 = vmatpush1.bf16.msra.mxu0 0
        %1097 = vmatprep.subr.bf16.mxu0 0
        %1098 = vmatpush1.bf16.msra.mxu0 0
        %1099 = vmatprep.subr.bf16.mxu0 0
        %1100 = vmatpush1.bf16.msra.mxu0 0
        %1101 = vmatprep.subr.bf16.mxu0 0
        %1102 = vmatpush1.bf16.msra.mxu0 0
        %1103 = vmatprep.subr.bf16.mxu0 0
        %1104 = vmatpush1.bf16.msra.mxu0 0
        %1105 = vmatprep.mubr.bf16.mxu0 0
        %1106 = vmatmul.mubr.bf16.gmra.mrb[0].mxu0 %v1020
        %v1107 = vpop.f32.mrb[0].mxu0
        %v1108 = vadd.f32 %v1024, %v1107
        %v1109 = vpop.f32.mrb[0].mxu0
        %v1110 = vpop.f32.mrb[0].mxu0
        %v1111 = vpop.f32.mrb[0].mxu0
        %1112 = vdwg.mxu0
        %v1113 = vtanh.pop %v1108
        %1114 = vadd.xlane.f32.xlu0 %v1113
        %v1115 = vpop.xlane.xlu0 %1114
        %v1116 = vmul.f32 %v1115, 0.03125
        %v1117 = vmul.f32 %v1113, %v1113
        %1118 = vadd.xlane.f32.xlu0 %v1117
        %v1119 = vpop.xlane.xlu0 %1118
        %v1120 = vmul.f32 %v1119, 0.03125
        %v1121 = vmul.f32 %v1116, %v1116
        %v1122 = vsub.f32 %v1120, %v1121
        %v1123 = vmax.f32 %v1122, 0.0
        %v1124 = vsub.f32 %v1113, %v1116
        %v1125 = vadd.f32 %v1123, 1e-05
        %v1126 = vrsqrt.pop %v1125
        %v1127 = vmul.f32 %v1124, %v1126
        %v1128 = vlaneseq
        %v1129 = vshrl.u32 %v1128, 7
        %v1130 = vsub.s32 0, %v1129
        %v1131 = vrot.slane %v1018, %v1130
        %v1132 = vmul.f32 %v1127, %v1131
        %v1133 = vlaneseq
        %v1134 = vshrl.u32 %v1133, 7
        %v1135 = vsub.s32 0, %v1134
        %v1136 = vrot.slane %v1019, %v1135
        %v1137 = vadd.f32 %v1132, %v1136
        %v1138 = vld [vmem:[%s7 + $0x1] sm:$0x1]
        %v1139 = vld [vmem:[%s8 + $0x1] sm:$0x1]
        %v1140 = vadd.f32 %v861, %v1137
        %v1141 = vtanh.pop %v1140
        %1142 = vadd.xlane.f32.xlu0 %v1141
        %v1143 = vpop.xlane.xlu0 %1142
        %v1144 = vmul.f32 %v1143, 0.03125
        %v1145 = vmul.f32 %v1141, %v1141
        %1146 = vadd.xlane.f32.xlu0 %v1145
        %v1147 = vpop.xlane.xlu0 %1146
        %v1148 = vmul.f32 %v1147, 0.03125
        %v1149 = vmul.f32 %v1144, %v1144
        %v1150 = vsub.f32 %v1148, %v1149
        %v1151 = vmax.f32 %v1150, 0.0
        %v1152 = vsub.f32 %v1141, %v1144
        %v1153 = vadd.f32 %v1151, 1e-05
        %v1154 = vrsqrt.pop %v1153
        %v1155 = vmul.f32 %v1152, %v1154
        %v1156 = vlaneseq
        %v1157 = vshrl.u32 %v1156, 7
        %v1158 = vsub.s32 0, %v1157
        %v1159 = vrot.slane %v1138, %v1158
        %v1160 = vmul.f32 %v1155, %v1159
        %v1161 = vlaneseq
        %v1162 = vshrl.u32 %v1161, 7
        %v1163 = vsub.s32 0, %v1162
        %v1164 = vrot.slane %v1139, %v1163
        %v1165 = vadd.f32 %v1160, %v1164
        %v1166 = vpack.c.bf16 %v1165, %v1165
        %v1167 = vld [vmem:[#allocation8] sm:$0xf]
        %v1168 = vld [vmem:[#allocation8 + $0x4] sm:$0xf]
        %v1169 = vld [vmem:[#allocation8 + $0x8] sm:$0xf]
        %v1170 = vld [vmem:[#allocation8 + $0xc] sm:$0xf]
        %v1171 = vld [vmem:[#allocation8 + $0x10] sm:$0xf]
        %v1172 = vld [vmem:[#allocation8 + $0x14] sm:$0xf]
        %v1173 = vld [vmem:[#allocation8 + $0x18] sm:$0xf]
        %v1174 = vld [vmem:[#allocation8 + $0x1c] sm:$0xf]
        %v1175 = vld [vmem:[#allocation8 + $0x20] sm:$0xf]
        %v1176 = vld [vmem:[#allocation8 + $0x24] sm:$0xf]
        %v1177 = vld [vmem:[#allocation8 + $0x28] sm:$0xf]
        %v1178 = vld [vmem:[#allocation8 + $0x2c] sm:$0xf]
        %v1179 = vld [vmem:[#allocation8 + $0x30] sm:$0xf]
        %v1180 = vld [vmem:[#allocation8 + $0x34] sm:$0xf]
        %v1181 = vld [vmem:[#allocation8 + $0x38] sm:$0xf]
        %v1182 = vld [vmem:[#allocation8 + $0x3c] sm:$0xf]
        %v1183 = vld [vmem:[%s10] sm:$0x1]
        %v1185 = vlaneseq
        %v1186 = vshrl.u32 %v1185, 7
        %v1187 = vsub.s32 0, %v1186
        %v1188 = vrot.slane %v1183, %v1187
        %v1206 = vunpack.c.l.b16 %v1167
        %v1207 = vunpack.c.l.b16 %v1168
        %v1208 = vunpack.c.l.b16 %v1169
        %v1209 = vunpack.c.l.b16 %v1170
        %v1210 = vunpack.c.l.b16 %v1171
        %v1211 = vunpack.c.l.b16 %v1172
        %v1212 = vunpack.c.l.b16 %v1173
        %v1213 = vunpack.c.l.b16 %v1174
        %v1214 = vunpack.c.l.b16 %v1175
        %v1215 = vunpack.c.l.b16 %v1176
        %v1216 = vunpack.c.l.b16 %v1177
        %v1217 = vunpack.c.l.b16 %v1178
        %v1218 = vunpack.c.l.b16 %v1179
        %v1219 = vunpack.c.l.b16 %v1180
        %v1220 = vunpack.c.l.b16 %v1181
        %v1221 = vunpack.c.l.b16 %v1182
        %v1222 = vpack.c.b16 %v1207, %v1206
        %v1223 = vpack.c.b16 %v1209, %v1208
        %v1224 = vpack.c.b16 %v1211, %v1210
        %v1225 = vpack.c.b16 %v1213, %v1212
        %v1226 = vpack.c.b16 %v1215, %v1214
        %v1227 = vpack.c.b16 %v1217, %v1216
        %v1228 = vpack.c.b16 %v1219, %v1218
        %v1229 = vpack.c.b16 %v1221, %v1220
        %1238 = vmatprep.subr.bf16.mxu0 0
        %1239 = vmatpush1.bf16.msra.mxu0 %v1222
        %1240 = vmatprep.subr.bf16.mxu0 0
        %1241 = vmatpush1.bf16.msra.mxu0 %v1223
        %1242 = vmatprep.subr.bf16.mxu0 0
        %1243 = vmatpush1.bf16.msra.mxu0 %v1224
        %1244 = vmatprep.subr.bf16.mxu0 0
        %1245 = vmatpush1.bf16.msra.mxu0 %v1225
        %1246 = vmatprep.subr.bf16.mxu0 0
        %1247 = vmatpush1.bf16.msra.mxu0 %v1226
        %1248 = vmatprep.subr.bf16.mxu0 0
        %1249 = vmatpush1.bf16.msra.mxu0 %v1227
        %1250 = vmatprep.subr.bf16.mxu0 0
        %1251 = vmatpush1.bf16.msra.mxu0 %v1228
        %1252 = vmatprep.subr.bf16.mxu0 0
        %1253 = vmatpush1.bf16.msra.mxu0 %v1229
        %1254 = vmatprep.subr.bf16.mxu0 0
        %1255 = vmatpush1.bf16.msra.mxu0 0
        %1256 = vmatprep.subr.bf16.mxu0 0
        %1257 = vmatpush1.bf16.msra.mxu0 0
        %1258 = vmatprep.subr.bf16.mxu0 0
        %1259 = vmatpush1.bf16.msra.mxu0 0
        %1260 = vmatprep.subr.bf16.mxu0 0
        %1261 = vmatpush1.bf16.msra.mxu0 0
        %1262 = vmatprep.subr.bf16.mxu0 0
        %1263 = vmatpush1.bf16.msra.mxu0 0
        %1264 = vmatprep.subr.bf16.mxu0 0
        %1265 = vmatpush1.bf16.msra.mxu0 0
        %1266 = vmatprep.subr.bf16.mxu0 0
        %1267 = vmatpush1.bf16.msra.mxu0 0
        %1268 = vmatprep.subr.bf16.mxu0 0
        %1269 = vmatpush1.bf16.msra.mxu0 0
        %1270 = vmatprep.mubr.bf16.mxu0 0
        %1271 = vmatmul.mubr.bf16.gmra.mrb[0].mxu0 %v1166
        %v1272 = vpop.f32.mrb[0].mxu0
        %v1273 = vadd.f32 %v1188, %v1272
        %v1274 = vpop.f32.mrb[0].mxu0
        %v1275 = vpop.f32.mrb[0].mxu0
        %v1276 = vpop.f32.mrb[0].mxu0
        %1277 = vdwg.mxu0
        %1278 = vst [vmem:[%s445] sm:$0xff] %v1273
        %s1279 = sand.u32 %s274, 1
        %s1280 = scalar_lea.sflag [#allocation4], %s1279
        %s1281 = sand.u32 %s274, 1
        %s1282 = smul.addr %s1281, 8
        %s1283 = scalar_lea.vmem [#allocation10], %s1282
        // Predicated region
        $region81: #{tpu_custom_call.1} parent=63 // pred_check
          %p1284 = pneg %p284
        $region82: #{tpu_custom_call.1} parent=63 // pred_check_branch
          %1286 = sbr.rel (%p1284) target = $region84
        $region83: #{tpu_custom_call.1} parent=63 // pred_region
          %s1288 = ssub.s32 128, 128
          %1289 = vsyncadd %s1280, %s1288
          %s1290 = smul.addr %s30, 128
          %s1291 = scalar_lea.hbm %s11, %s1290
          %s1293 = sshll.u32 %s1283, 4
          %s1294 = int_to_ptr.vmem [resolvable:$true] %s1293
          %1296 = dma.vmem_to_hbm [thread:$0]  %s1294, 128, %s1291, %s1280
        $region84: #{tpu_custom_call.1} parent=63 // pred_fallthru
          _
      $region64: #{tpu_custom_call.1} parent=5 // pred_fallthru
        _
      %p1297 = scmp.le.s32.totalorder 2, %s25
      // Predicated region
      $region85: #{tpu_custom_call.1} parent=5 // pred_check
        %p1298 = pneg %p1297
      $region86: #{tpu_custom_call.1} parent=5 // pred_check_branch
        %1300 = sbr.rel (%p1298) target = $region88
      $region87: #{tpu_custom_call.1} parent=5 // pred_region
        %s1301 = ssub.s32 %s25, 2
        // Predicated region
        $region89: #{tpu_custom_call.1} parent=87 // pred_check
          %p1302 = pneg %p290
        $region90: #{tpu_custom_call.1} parent=87 // pred_check_branch
          %1304 = sbr.rel (%p1302) target = $region92
        $region91: #{tpu_custom_call.1} parent=87 // pred_region
          %s1305 = sand.u32 %s275, 1
          %s1306 = scalar_lea.sflag [#allocation4], %s1305
          %s1307 = sand.u32 %s275, 1
          %s1308 = smul.addr %s1307, 8
          %s1309 = scalar_lea.vmem [#allocation10], %s1308
          %1310 = dma.done %s1306, 128
        $region92: #{tpu_custom_call.1} parent=87 // pred_fallthru
          _
      $region88: #{tpu_custom_call.1} parent=5 // pred_fallthru
        _
    $region6: #{tpu_custom_call.1} parent=1 // loop_footer
      %s29 = sadd.s32 1, %s25
    $region7: #{tpu_custom_call.1} parent=1 // loop_footer_branch
      %24 = sbr.rel target = $region3
    $region8: #{tpu_custom_call.1} parent=1 // loop_exit
      _
    %1311 = vsyncpa [#allocation3], 1
    %s1312 = scalar_lea.sflag [#allocation3], 1
    %1313 = vsyncpa %s1312, 1
    %1314 = vsyncpa [#allocation6], 1
    %1315 = vsyncpa [#allocation9], 1
    %1316 = vsyncpa [#allocation4], 1
    %s1317 = scalar_lea.sflag [#allocation4], 1
    %1318 = vsyncpa %s1317, 1

</llo_original>
